<compile_context>
chip_gen: v7x
topology: tpu7x:2x2x1
jax: 0.10.0
libtpu: 0.0.40
codegen_flags: <defaults>
</compile_context>

<pallas_src>
import numpy as np

import jax
import jax.numpy as jnp
from jax.experimental import pallas as pl
from jax.experimental.pallas import tpu as pltpu


def _pair(v):
    return tuple(v) if isinstance(v, (tuple, list)) else (v, v)


def _vmem_budget_bytes():
    """~3/4 of physical VMEM (generation-aware); conservative fallback."""
    try:
        cap = int(pltpu.get_tpu_info().vmem_capacity_bytes)
    except Exception:
        cap = 64 * 2 ** 20
    return (cap * 3) // 4


# ----------------------------- Pallas kernel ------------------------------ #
def _make_conv_kernel(*, TR, OW, KH, KW, G, ICg, OCg, sh, sw, dh, dw,
                      compute_dtype):
    """One (TR, OW) output-row tile: im2col strip in VMEM + one dot per group."""
    Kg = KH * KW * ICg
    M = TR * OW

    def _span(off, size, stride):
        # Contiguous static slice for stride == 1 (the common case); strided
        # VMEM read otherwise.
        if stride == 1:
            return slice(off, off + size)
        return pl.ds(off, size, stride)

    def kernel(x_ref, w_ref, b_ref, o_ref, strip_ref):
        # x_ref:     (TRin, Wp, IC)   activations (haloed row slab), compute_dtype
        # w_ref:     (G, Kg, OCg)     bf16 weights (exact upcast of fp8 storage)
        # b_ref:     (1, OC)          f32 bias
        # o_ref:     (TR, OW, OC)     f32 output-row tile (NHWC)
        # strip_ref: (M, Kg)          im2col strip scratch, compute_dtype
        for g in range(G):
            ci = g * ICg
            co = g * OCg
            # Build the im2col strip once per tile/group: one store per tap,
            # all reads come from the VMEM-resident input slab (never HBM).
            for i in range(KH):
                rs = _span(i * dh, TR, sh)
                for j in range(KW):
                    cs = _span(j * dw, OW, sw)
                    win = x_ref[rs, cs, ci:ci + ICg]            # (TR, OW, ICg)
                    t = i * KW + j
                    strip_ref[:, t * ICg:(t + 1) * ICg] = win.reshape(M, ICg)
            # Single MXU dot with the taps folded into K (K = KH*KW*ICg).
            wt = w_ref[g].astype(compute_dtype)                  # exact widen
            acc = jnp.dot(strip_ref[...], wt,
                          preferred_element_type=jnp.float32)    # (M, OCg) f32
            acc = acc + b_ref[:, co:co + OCg]                    # f32 epilogue
            # Per-group direct store (no concatenate / extra relayout).
            o_ref[:, :, co:co + OCg] = acc.reshape(TR, OW, OCg).astype(
                o_ref.dtype)

    return kernel


# ------------------------------ module wrapper ----------------------------- #
class MinifloatConv2d:
    """JAX/Pallas port of the PyTorch MinifloatConv2d module (NCHW interface)."""

    def __init__(self, weight, bias, stride, dilation, groups, padding,
                 *, compute_dtype=jnp.float32, row_tile=None):
        weight = jnp.asarray(weight)
        # The minifloat quantization step (.to(torch.float8_e4m3fn)).
        self.weight = weight.astype(jnp.float8_e4m3fn)            # (OC, ICg, KH, KW)
        self.bias = (jnp.asarray(bias).astype(jnp.float8_e4m3fn)
                     if bias is not None else None)
        self.stride = _pair(stride)
        self.dilation = _pair(dilation)
        self.padding = _pair(padding)
        self.groups = int(groups)
        self.compute_dtype = jnp.dtype(compute_dtype)
        self.row_tile = row_tile                                   # manual override
        # Activation dtype DMA'd into the kernel (bf16 mode halves input bytes;
        # note bf16 compute is an accuracy/perf trade vs. the f32-conv spec).
        self._act_dtype = (jnp.bfloat16 if self.compute_dtype == jnp.bfloat16
                           else jnp.float32)

        OC, ICg, KH, KW = self.weight.shape
        G = self.groups
        assert OC % G == 0
        OCg = OC // G
        self._dims = (OC, OCg, ICg, KH, KW, G)
        Kg = KH * KW * ICg

        # Kernel-layout weights: fp8 -> bf16 is exact; K ordered (kh, kw, icg)
        # to match the im2col strip built inside the kernel.
        # TODO(synk): on v7x feed the fp8 weights straight to the MXU.
        w_bf16 = self.weight.astype(jnp.bfloat16)
        w_bf16 = w_bf16.reshape(G, OCg, ICg, KH, KW).transpose(0, 3, 4, 2, 1)
        self._w_kernel = w_bf16.reshape(G, Kg, OCg)
        if self.bias is not None:
            self._b_kernel = self.bias.astype(jnp.float32).reshape(1, OC)
        else:
            self._b_kernel = jnp.zeros((1, OC), jnp.float32)

    # ---- row-tile sizing against the generation-aware VMEM budget -------- #
    def _pick_row_tile(self, OH, OW, Wp, IC, budget):
        OC, OCg, ICg, KH, KW, G = self._dims
        Kg = KH * KW * ICg
        sh, _ = self.stride
        dh, _ = self.dilation
        a_sz = jnp.dtype(self._act_dtype).itemsize

        def est(tr):
            trin = (tr - 1) * sh + dh * (KH - 1) + 1
            in_t = trin * Wp * IC * a_sz                 # double-buffered input
            out_t = tr * OW * OC * 4                     # double-buffered output
            strip = tr * OW * Kg * a_sz                  # im2col scratch
            w_b = G * Kg * OCg * 2 + OC * 4              # resident weights/bias
            tmp = tr * OW * (2 * OCg + ICg) * 4 + (2 << 20)   # dot/relayout temps
            return 2 * (in_t + out_t) + strip + w_b + tmp

        tr = OH
        while tr > 1 and est(tr) > budget:
            tr = (tr + 1) // 2
        return tr

    def __call__(self, x):
        OC, OCg, ICg, KH, KW, G = self._dims
        Kg = KH * KW * ICg
        N, IC, H, W = x.shape
        assert IC == G * ICg
        sh, sw = self.stride
        dh, dw = self.dilation
        ph, pw = self.padding
        Hp, Wp = H + 2 * ph, W + 2 * pw
        OH = (Hp - dh * (KH - 1) - 1) // sh + 1
        OW = (Wp - dw * (KW - 1) - 1) // sw + 1

        budget = _vmem_budget_bytes()
        if self.row_tile is not None:
            TR = max(1, min(int(self.row_tile), OH))
        else:
            TR = self._pick_row_tile(OH, OW, Wp, IC, budget)
        R = -(-OH // TR)
        OH_pad = R * TR
        TRin = (TR - 1) * sh + dh * (KH - 1) + 1
        Hp_need = (OH_pad - 1) * sh + dh * (KH - 1) + 1   # rows the last tile touches

        # input.to(float32) [or bf16 fast path]; one NCHW->NHWC relayout +
        # spatial zero pad (extra bottom rows cover output-row padding).
        xk = x.astype(self._act_dtype).transpose(0, 2, 3, 1)
        extra_h = max(0, Hp_need - Hp)
        if ph or pw or extra_h:
            xk = jnp.pad(xk, ((0, 0), (ph, ph + extra_h), (pw, pw), (0, 0)))

        # Overlapping (haloed) row windows -- one per row tile -- staged so
        # plain blocked BlockSpecs can pipeline them.  Overlap ~ 1 + halo/(TR*sh).
        # TODO(synk): replace with pl.Element element-offset windows on H to
        # avoid this staging copy.
        row_idx = (np.arange(R)[:, None] * (TR * sh)
                   + np.arange(TRin)[None, :])             # (R, TRin)
        x_tiles = xk[:, row_idx]                            # (N, R, TRin, Wp, IC)

        kernel = _make_conv_kernel(TR=TR, OW=OW, KH=KH, KW=KW, G=G, ICg=ICg,
                                   OCg=OCg, sh=sh, sw=sw, dh=dh, dw=dw,
                                   compute_dtype=self.compute_dtype)

        out_nhwc = pl.pallas_call(
            kernel,
            out_shape=jax.ShapeDtypeStruct((N, OH_pad, OW, OC), jnp.float32),
            grid_spec=pltpu.PrefetchScalarGridSpec(
                num_scalar_prefetch=0,
                grid=(N, R),
                in_specs=[
                    # One haloed input row slab per grid step.
                    pl.BlockSpec((None, None, TRin, Wp, IC),
                                 lambda n, r: (n, r, 0, 0, 0)),
                    # Tiny bf16 weights / f32 bias: resident, fetched once.
                    pl.BlockSpec((G, Kg, OCg), lambda n, r: (0, 0, 0)),
                    pl.BlockSpec((1, OC), lambda n, r: (0, 0)),
                ],
                out_specs=pl.BlockSpec((None, TR, OW, OC),
                                       lambda n, r: (n, r, 0, 0)),
                scratch_shapes=[
                    pltpu.VMEM((TR * OW, Kg), self.compute_dtype),  # im2col strip
                ],
            ),
            compiler_params=pltpu.CompilerParams(
                dimension_semantics=("parallel", "parallel"),
                vmem_limit_bytes=int(budget),
            ),
        )(x_tiles, self._w_kernel, self._b_kernel)

        out_nhwc = out_nhwc[:, :OH]                         # drop row padding
        return out_nhwc.transpose(0, 3, 1, 2)               # NHWC -> NCHW, once


# --------------------------------- reference -------------------------------- #
def _reference_conv(x, w_fp8, b_fp8, stride, dilation, groups, padding):
    w = w_fp8.astype(jnp.float32)
    out = jax.lax.conv_general_dilated(
        x.astype(jnp.float32), w, window_strides=stride,
        padding=[(padding[0], padding[0]), (padding[1], padding[1])],
        rhs_dilation=dilation,
        dimension_numbers=("NCHW", "OIHW", "NCHW"),
        feature_group_count=groups,
    )
    if b_fp8 is not None:
        out = out + b_fp8.astype(jnp.float32).reshape(1, -1, 1, 1)
    return out


# ----------------------------------- main ----------------------------------- #
if __name__ == "__main__":
    key = jax.random.PRNGKey(0)
    k0, k1, k2, k3, k4 = jax.random.split(key, 5)

    # ---- config A: basic conv with bias, padding=1 --------------------------
    N, IC, H, W = 2, 4, 16, 16
    OC, KH, KW = 8, 3, 3
    stride, dilation, groups, padding = (1, 1), (1, 1), 1, (1, 1)

    # Snap activations to the bf16 grid so the f32 and bf16 compute paths and
    # the XLA reference all see exactly-representable operands: the asserts
    # then check kernel logic, not MXU rounding-mode differences.
    x = jax.random.normal(k0, (N, IC, H, W), jnp.float32)
    x = x.astype(jnp.bfloat16).astype(jnp.float32)
    w = jax.random.normal(k1, (OC, IC // groups, KH, KW), jnp.float32) * 0.1
    b = jax.random.normal(k2, (OC,), jnp.float32) * 0.1

    mod = MinifloatConv2d(w, b, stride, dilation, groups, padding)
    y = jax.block_until_ready(mod(x))
    ref = _reference_conv(x, mod.weight, mod.bias, stride, dilation, groups,
                          padding)
    np.testing.assert_allclose(np.asarray(y), np.asarray(ref),
                               atol=1e-4, rtol=1e-4)

    # bf16 MXU-operand variant (activations cast before the call; weight exact).
    mod_bf16 = MinifloatConv2d(w, b, stride, dilation, groups, padding,
                               compute_dtype=jnp.bfloat16)
    y_bf16 = jax.block_until_ready(mod_bf16(x))
    np.testing.assert_allclose(np.asarray(y_bf16), np.asarray(ref),
                               atol=1e-3, rtol=1e-3)

    # ---- config B: grouped + dilated conv, no bias ---------------------------
    N2, IC2, H2, W2 = 2, 8, 12, 16
    OC2, G2 = 8, 2
    dil2, pad2 = (2, 2), (2, 2)
    x2 = jax.random.normal(k3, (N2, IC2, H2, W2), jnp.float32)
    x2 = x2.astype(jnp.bfloat16).astype(jnp.float32)
    w2 = jax.random.normal(k4, (OC2, IC2 // G2, KH, KW), jnp.float32) * 0.1

    mod2 = MinifloatConv2d(w2, None, (1, 1), dil2, G2, pad2)
    y2 = jax.block_until_ready(mod2(x2))
    ref2 = _reference_conv(x2, mod2.weight, None, (1, 1), dil2, G2, pad2)
    np.testing.assert_allclose(np.asarray(y2), np.asarray(ref2),
                               atol=1e-4, rtol=1e-4)

    # ---- config C: same as A but forcing multiple row tiles (halo path) ------
    mod3 = MinifloatConv2d(w, b, stride, dilation, groups, padding, row_tile=5)
    y3 = jax.block_until_ready(mod3(x))
    np.testing.assert_allclose(np.asarray(y3), np.asarray(ref),
                               atol=1e-4, rtol=1e-4)

    print("KERNEL_OK")
</pallas_src>

<mosaic_0001>
module attributes {stable_mosaic.version = 11 : i64} {
  func.func @kernel(%arg0: i32, %arg1: i32, %arg2: memref<1x1x18x18x4xf32, #tpu.memory_space<vmem>>, %arg3: memref<1x36x8xbf16, #tpu.memory_space<vmem>>, %arg4: memref<1x8xf32, #tpu.memory_space<vmem>>, %arg5: memref<1x16x16x8xf32, #tpu.memory_space<vmem>>, %arg6: memref<256x36xf32, #tpu.memory_space<vmem>>) attributes {dimension_semantics = [#tpu.dimension_semantics<parallel>, #tpu.dimension_semantics<parallel>], iteration_bounds = array<i64: 2, 1>, scalar_prefetch = 0 : i64, scratch_operands = 1 : i64, tpu.core_type = #tpu.core_type<tc>, window_params = [{transform_indices = @transform_0, window_bounds = array<i64: 1, 1, 18, 18, 4>}, {pipeline_mode = #tpu.pipeline_mode<synchronous>, transform_indices = @transform_1, window_bounds = array<i64: 1, 36, 8>}, {pipeline_mode = #tpu.pipeline_mode<synchronous>, transform_indices = @transform_2, window_bounds = array<i64: 1, 8>}, {transform_indices = @transform_3, window_bounds = array<i64: 1, 16, 16, 8>}]} {
    %c0 = arith.constant 0 : index
    %c0_0 = arith.constant 0 : index
    %c0_1 = arith.constant 0 : index
    %c0_2 = arith.constant 0 : index
    %c0_3 = arith.constant 0 : index
    %0 = vector.load %arg2[%c0, %c0_0, %c0_1, %c0_2, %c0_3] : memref<1x1x18x18x4xf32, #tpu.memory_space<vmem>>, vector<1x1x16x16x4xf32>
    %1 = vector.shape_cast %0 : vector<1x1x16x16x4xf32> to vector<16x16x4xf32>
    %2 = vector.shape_cast %1 : vector<16x16x4xf32> to vector<256x4xf32>
    %c0_4 = arith.constant 0 : index
    %c0_5 = arith.constant 0 : index
    %3 = vector.load %arg6[%c0_4, %c0_5] : memref<256x36xf32, #tpu.memory_space<vmem>>, vector<256x4xf32>
    tpu.vector_store %arg6[%c0_4, %c0_5], %2 {strides = array<i32>} : memref<256x36xf32, #tpu.memory_space<vmem>>, vector<256x4xf32>,
    %c0_6 = arith.constant 0 : index
    %c0_7 = arith.constant 0 : index
    %c0_8 = arith.constant 0 : index
    %c1 = arith.constant 1 : index
    %c0_9 = arith.constant 0 : index
    %4 = vector.load %arg2[%c0_6, %c0_7, %c0_8, %c1, %c0_9] : memref<1x1x18x18x4xf32, #tpu.memory_space<vmem>>, vector<1x1x16x16x4xf32>
    %5 = vector.shape_cast %4 : vector<1x1x16x16x4xf32> to vector<16x16x4xf32>
    %6 = vector.shape_cast %5 : vector<16x16x4xf32> to vector<256x4xf32>
    %c0_10 = arith.constant 0 : index
    %c4 = arith.constant 4 : index
    %7 = vector.load %arg6[%c0_10, %c4] : memref<256x36xf32, #tpu.memory_space<vmem>>, vector<256x4xf32>
    tpu.vector_store %arg6[%c0_10, %c4], %6 {strides = array<i32>} : memref<256x36xf32, #tpu.memory_space<vmem>>, vector<256x4xf32>,
    %c0_11 = arith.constant 0 : index
    %c0_12 = arith.constant 0 : index
    %c0_13 = arith.constant 0 : index
    %c2 = arith.constant 2 : index
    %c0_14 = arith.constant 0 : index
    %8 = vector.load %arg2[%c0_11, %c0_12, %c0_13, %c2, %c0_14] : memref<1x1x18x18x4xf32, #tpu.memory_space<vmem>>, vector<1x1x16x16x4xf32>
    %9 = vector.shape_cast %8 : vector<1x1x16x16x4xf32> to vector<16x16x4xf32>
    %10 = vector.shape_cast %9 : vector<16x16x4xf32> to vector<256x4xf32>
    %c0_15 = arith.constant 0 : index
    %c8 = arith.constant 8 : index
    %11 = vector.load %arg6[%c0_15, %c8] : memref<256x36xf32, #tpu.memory_space<vmem>>, vector<256x4xf32>
    tpu.vector_store %arg6[%c0_15, %c8], %10 {strides = array<i32>} : memref<256x36xf32, #tpu.memory_space<vmem>>, vector<256x4xf32>,
    %c0_16 = arith.constant 0 : index
    %c0_17 = arith.constant 0 : index
    %c1_18 = arith.constant 1 : index
    %c0_19 = arith.constant 0 : index
    %c0_20 = arith.constant 0 : index
    %12 = vector.load %arg2[%c0_16, %c0_17, %c1_18, %c0_19, %c0_20] : memref<1x1x18x18x4xf32, #tpu.memory_space<vmem>>, vector<1x1x16x16x4xf32>
    %13 = vector.shape_cast %12 : vector<1x1x16x16x4xf32> to vector<16x16x4xf32>
    %14 = vector.shape_cast %13 : vector<16x16x4xf32> to vector<256x4xf32>
    %c0_21 = arith.constant 0 : index
    %c12 = arith.constant 12 : index
    %15 = vector.load %arg6[%c0_21, %c12] : memref<256x36xf32, #tpu.memory_space<vmem>>, vector<256x4xf32>
    tpu.vector_store %arg6[%c0_21, %c12], %14 {strides = array<i32>} : memref<256x36xf32, #tpu.memory_space<vmem>>, vector<256x4xf32>,
    %c0_22 = arith.constant 0 : index
    %c0_23 = arith.constant 0 : index
    %c1_24 = arith.constant 1 : index
    %c1_25 = arith.constant 1 : index
    %c0_26 = arith.constant 0 : index
    %16 = vector.load %arg2[%c0_22, %c0_23, %c1_24, %c1_25, %c0_26] : memref<1x1x18x18x4xf32, #tpu.memory_space<vmem>>, vector<1x1x16x16x4xf32>
    %17 = vector.shape_cast %16 : vector<1x1x16x16x4xf32> to vector<16x16x4xf32>
    %18 = vector.shape_cast %17 : vector<16x16x4xf32> to vector<256x4xf32>
    %c0_27 = arith.constant 0 : index
    %c16 = arith.constant 16 : index
    %19 = vector.load %arg6[%c0_27, %c16] : memref<256x36xf32, #tpu.memory_space<vmem>>, vector<256x4xf32>
    tpu.vector_store %arg6[%c0_27, %c16], %18 {strides = array<i32>} : memref<256x36xf32, #tpu.memory_space<vmem>>, vector<256x4xf32>,
    %c0_28 = arith.constant 0 : index
    %c0_29 = arith.constant 0 : index
    %c1_30 = arith.constant 1 : index
    %c2_31 = arith.constant 2 : index
    %c0_32 = arith.constant 0 : index
    %20 = vector.load %arg2[%c0_28, %c0_29, %c1_30, %c2_31, %c0_32] : memref<1x1x18x18x4xf32, #tpu.memory_space<vmem>>, vector<1x1x16x16x4xf32>
    %21 = vector.shape_cast %20 : vector<1x1x16x16x4xf32> to vector<16x16x4xf32>
    %22 = vector.shape_cast %21 : vector<16x16x4xf32> to vector<256x4xf32>
    %c0_33 = arith.constant 0 : index
    %c20 = arith.constant 20 : index
    %23 = vector.load %arg6[%c0_33, %c20] : memref<256x36xf32, #tpu.memory_space<vmem>>, vector<256x4xf32>
    tpu.vector_store %arg6[%c0_33, %c20], %22 {strides = array<i32>} : memref<256x36xf32, #tpu.memory_space<vmem>>, vector<256x4xf32>,
    %c0_34 = arith.constant 0 : index
    %c0_35 = arith.constant 0 : index
    %c2_36 = arith.constant 2 : index
    %c0_37 = arith.constant 0 : index
    %c0_38 = arith.constant 0 : index
    %24 = vector.load %arg2[%c0_34, %c0_35, %c2_36, %c0_37, %c0_38] : memref<1x1x18x18x4xf32, #tpu.memory_space<vmem>>, vector<1x1x16x16x4xf32>
    %25 = vector.shape_cast %24 : vector<1x1x16x16x4xf32> to vector<16x16x4xf32>
    %26 = vector.shape_cast %25 : vector<16x16x4xf32> to vector<256x4xf32>
    %c0_39 = arith.constant 0 : index
    %c24 = arith.constant 24 : index
    %27 = vector.load %arg6[%c0_39, %c24] : memref<256x36xf32, #tpu.memory_space<vmem>>, vector<256x4xf32>
    tpu.vector_store %arg6[%c0_39, %c24], %26 {strides = array<i32>} : memref<256x36xf32, #tpu.memory_space<vmem>>, vector<256x4xf32>,
    %c0_40 = arith.constant 0 : index
    %c0_41 = arith.constant 0 : index
    %c2_42 = arith.constant 2 : index
    %c1_43 = arith.constant 1 : index
    %c0_44 = arith.constant 0 : index
    %28 = vector.load %arg2[%c0_40, %c0_41, %c2_42, %c1_43, %c0_44] : memref<1x1x18x18x4xf32, #tpu.memory_space<vmem>>, vector<1x1x16x16x4xf32>
    %29 = vector.shape_cast %28 : vector<1x1x16x16x4xf32> to vector<16x16x4xf32>
    %30 = vector.shape_cast %29 : vector<16x16x4xf32> to vector<256x4xf32>
    %c0_45 = arith.constant 0 : index
    %c28 = arith.constant 28 : index
    %31 = vector.load %arg6[%c0_45, %c28] : memref<256x36xf32, #tpu.memory_space<vmem>>, vector<256x4xf32>
    tpu.vector_store %arg6[%c0_45, %c28], %30 {strides = array<i32>} : memref<256x36xf32, #tpu.memory_space<vmem>>, vector<256x4xf32>,
    %c0_46 = arith.constant 0 : index
    %c0_47 = arith.constant 0 : index
    %c2_48 = arith.constant 2 : index
    %c2_49 = arith.constant 2 : index
    %c0_50 = arith.constant 0 : index
    %32 = vector.load %arg2[%c0_46, %c0_47, %c2_48, %c2_49, %c0_50] : memref<1x1x18x18x4xf32, #tpu.memory_space<vmem>>, vector<1x1x16x16x4xf32>
    %33 = vector.shape_cast %32 : vector<1x1x16x16x4xf32> to vector<16x16x4xf32>
    %34 = vector.shape_cast %33 : vector<16x16x4xf32> to vector<256x4xf32>
    %c0_51 = arith.constant 0 : index
    %c32 = arith.constant 32 : index
    %35 = vector.load %arg6[%c0_51, %c32] : memref<256x36xf32, #tpu.memory_space<vmem>>, vector<256x4xf32>
    tpu.vector_store %arg6[%c0_51, %c32], %34 {strides = array<i32>} : memref<256x36xf32, #tpu.memory_space<vmem>>, vector<256x4xf32>,
    %c0_52 = arith.constant 0 : index
    %c0_53 = arith.constant 0 : index
    %c0_54 = arith.constant 0 : index
    %36 = vector.load %arg3[%c0_52, %c0_53, %c0_54] : memref<1x36x8xbf16, #tpu.memory_space<vmem>>, vector<1x36x8xbf16>
    %37 = vector.shape_cast %36 : vector<1x36x8xbf16> to vector<36x8xbf16>
    %38 = arith.extf %37 : vector<36x8xbf16> to vector<36x8xf32>
    %c0_55 = arith.constant 0 : index
    %c0_56 = arith.constant 0 : index
    %39 = vector.load %arg6[%c0_55, %c0_56] : memref<256x36xf32, #tpu.memory_space<vmem>>, vector<256x36xf32>
    %cst = arith.constant dense<0.000000e+00> : vector<256x8xf32>
    %40 = tpu.matmul %39, %38, %cst {dimension_numbers = #tpu.dot_dimension_numbers<[1], [0], [0], [1], [0, 0, 1, 1], [], []>} : vector<256x36xf32>, vector<36x8xf32>, vector<256x8xf32> -> vector<256x8xf32>
    %c0_57 = arith.constant 0 : index
    %c0_58 = arith.constant 0 : index
    %41 = vector.load %arg4[%c0_57, %c0_58] : memref<1x8xf32, #tpu.memory_space<vmem>>, vector<1x8xf32>
    %42 = vector.broadcast %41 : vector<1x8xf32> to vector<256x8xf32>
    %43 = arith.addf %40, %42 : vector<256x8xf32>
    %44 = vector.shape_cast %43 : vector<256x8xf32> to vector<16x16x8xf32>
    %c0_59 = arith.constant 0 : index
    %c0_60 = arith.constant 0 : index
    %c0_61 = arith.constant 0 : index
    %c0_62 = arith.constant 0 : index
    %45 = vector.load %arg5[%c0_59, %c0_60, %c0_61, %c0_62] : memref<1x16x16x8xf32, #tpu.memory_space<vmem>>, vector<1x16x16x8xf32>
    %46 = vector.shape_cast %45 : vector<1x16x16x8xf32> to vector<16x16x8xf32>
    %47 = vector.shape_cast %44 : vector<16x16x8xf32> to vector<1x16x16x8xf32>
    tpu.vector_store %arg5[%c0_59, %c0_60, %c0_61, %c0_62], %47 {strides = array<i32>} : memref<1x16x16x8xf32, #tpu.memory_space<vmem>>, vector<1x16x16x8xf32>,
    return
  }
  func.func @transform_0(%arg0: i32, %arg1: i32) -> (i32, i32, i32, i32, i32) {
    %c0_i32 = arith.constant 0 : i32
    %c0_i32_0 = arith.constant 0 : i32
    %c0_i32_1 = arith.constant 0 : i32
    %c0_i32_2 = arith.constant 0 : i32
    return %arg0, %arg1, %c0_i32, %c0_i32_0, %c0_i32_1 : i32, i32, i32, i32, i32
  }
  func.func @transform_1(%arg0: i32, %arg1: i32) -> (i32, i32, i32) {
    %c0_i32 = arith.constant 0 : i32
    %c0_i32_0 = arith.constant 0 : i32
    %c0_i32_1 = arith.constant 0 : i32
    %c0_i32_2 = arith.constant 0 : i32
    return %c0_i32, %c0_i32_0, %c0_i32_1 : i32, i32, i32
  }
  func.func @transform_2(%arg0: i32, %arg1: i32) -> (i32, i32) {
    %c0_i32 = arith.constant 0 : i32
    %c0_i32_0 = arith.constant 0 : i32
    %c0_i32_1 = arith.constant 0 : i32
    return %c0_i32, %c0_i32_0 : i32, i32
  }
  func.func @transform_3(%arg0: i32, %arg1: i32) -> (i32, i32, i32, i32) {
    %c0_i32 = arith.constant 0 : i32
    %c0_i32_0 = arith.constant 0 : i32
    %c0_i32_1 = arith.constant 0 : i32
    return %arg0, %arg1, %c0_i32, %c0_i32_0 : i32, i32, i32, i32
  }
}

</mosaic_0001>

<llo_original>
// kernel: tpu_custom_call.1
$region0: #{tpu_custom_call.1}
  #allocation0 [shape = 'u32[]', space=smem, size = 0x4, offset = 0x4, fixed_abs, tag = 'smem constant byte address 0x4 - core index']
  #allocation1 [shape = 'u32[144,128]{1,0:T(1,128)}', space=vmem, size = 0x12000, scoped, tag = 'internal scratch']
  #allocation2 [shape = 'f32[256,36]{1,0:T(8,128)}', space=vmem, size = 0x20000, scoped, tag = 'scratch operand']
  %s0 = inlined_call_operand.vmem [shape: f32[2,1,18,18,4], index: 0, kind: input, shape index: {}]
  %s1 = inlined_call_operand.vmem [shape: bf16[1,36,8], index: 1, kind: input, shape index: {}]
  %s2 = inlined_call_operand.vmem [shape: f32[1,8], index: 2, kind: input, shape index: {}]
  %s3 = inlined_call_operand.vmem [shape: f32[2,16,16,8], index: 3, kind: output, shape index: {}]
  %s4 = sld [smem:[#allocation0]]
  $region45: #{tpu_custom_call.1} parent=0
    _
  %s6 = ssub.s32 1, %s4
  %s7 = scalar_select 0, %s6, %s4
  loop: start=0, step=1, limit=4
  $region2: #{tpu_custom_call.1} parent=0 // loop_pre_header
    _
  $region3: #{tpu_custom_call.1} parent=0 // loop_header
    %s9 = sphi 0, %s13
    %p10 = scmp.ge.s32.totalorder %s9, 4
    %s16 = sphi 0, %s28
    %s17 = sphi 0, %s24
    %s18 = sphi 0, %s16
    %s19 = sphi 0, %s17
    %s20 = sphi 0, %s18
    %s21 = sphi 0, %s19
    %s33 = sphi 0, %s35
    %s36 = sphi 0, %s33
    %s37 = sphi 0, %s36
    %s53 = sphi 0, %s37
    %s57 = sphi 0, %s57
    %s59 = sphi 0, %s57
    %s60 = sphi 0, %s59
    %s74 = sphi 0, %s60
    %s78 = sphi 0, %s78
    %s80 = sphi 0, %s78
    %s81 = sphi 0, %s80
    %s95 = sphi 0, %s81
    %s103 = sphi 0, %s105
    %s106 = sphi 0, %s103
    %s107 = sphi 0, %s106
    %s123 = sphi 0, %s107
  $region4: #{tpu_custom_call.1} parent=0 // loop_header_branch
    %12 = sbr.rel (%p10) target = $region8
  $region5: #{tpu_custom_call.1} parent=0 // loop_body
    %s14 = ssub.s32 %s9, 1
    %s15 = ssub.s32 %s9, 2
    %s22 = sadd.s32 1, %s17
    %p23 = scmp.ge.s32.totalorder %s22, 1
    %s24 = scalar_select %p23, 0, %s22
    %s25 = sadd.s32 1, %s16
    %s26 = scalar_select %p23, %s25, %s16
    %p27 = scmp.ge.s32.totalorder %s26, 2
    %s28 = scalar_select %p27, 0, %s26
    %s29 = ssub.s32 %s16, %s28
    %s30 = ssub.s32 %s17, %s24
    %s31 = sor.u32 %s29, %s30
    %p32 = scmp.eq.s32.totalorder %s31, 0
    %s34 = sadd.s32 %s33, 1
    %s35 = scalar_select %p32, %s33, %s34
    %p38 = pneg %p32
    %p39 = scmp.eq.s32.totalorder %s9, 1
    %p40 = por %p38, %p39
    %p41 = scmp.ne.s32.totalorder %s33, %s36
    %p42 = scmp.eq.s32.totalorder %s9, 0
    %p43 = por %p41, %p42
    %p44 = scmp.ne.s32.totalorder %s33, %s36
    %p45 = scmp.eq.s32.totalorder %s14, 1
    %p46 = por %p44, %p45
    %p47 = scmp.ne.s32.totalorder %s36, %s37
    %p48 = scmp.eq.s32.totalorder %s14, 0
    %p49 = por %p47, %p48
    %p50 = scmp.ne.s32.totalorder %s36, %s37
    %p51 = scmp.eq.s32.totalorder %s15, 1
    %p52 = por %p50, %p51
    %p54 = scmp.ne.s32.totalorder %s37, %s53
    %p55 = scmp.eq.s32.totalorder %s15, 0
    %p56 = por %p54, %p55
    %s58 = sadd.s32 %s57, 1
    %p61 = scmp.eq.s32.totalorder %s9, 1
    %p62 = scmp.ne.s32.totalorder %s57, %s59
    %p63 = scmp.eq.s32.totalorder %s9, 0
    %p64 = por %p62, %p63
    %p65 = scmp.ne.s32.totalorder %s57, %s59
    %p66 = scmp.eq.s32.totalorder %s14, 1
    %p67 = por %p65, %p66
    %p68 = scmp.ne.s32.totalorder %s59, %s60
    %p69 = scmp.eq.s32.totalorder %s14, 0
    %p70 = por %p68, %p69
    %p71 = scmp.ne.s32.totalorder %s59, %s60
    %p72 = scmp.eq.s32.totalorder %s15, 1
    %p73 = por %p71, %p72
    %p75 = scmp.ne.s32.totalorder %s60, %s74
    %p76 = scmp.eq.s32.totalorder %s15, 0
    %p77 = por %p75, %p76
    %s79 = sadd.s32 %s78, 1
    %p82 = scmp.eq.s32.totalorder %s9, 1
    %p83 = scmp.ne.s32.totalorder %s78, %s80
    %p84 = scmp.eq.s32.totalorder %s9, 0
    %p85 = por %p83, %p84
    %p86 = scmp.ne.s32.totalorder %s78, %s80
    %p87 = scmp.eq.s32.totalorder %s14, 1
    %p88 = por %p86, %p87
    %p89 = scmp.ne.s32.totalorder %s80, %s81
    %p90 = scmp.eq.s32.totalorder %s14, 0
    %p91 = por %p89, %p90
    %p92 = scmp.ne.s32.totalorder %s80, %s81
    %p93 = scmp.eq.s32.totalorder %s15, 1
    %p94 = por %p92, %p93
    %p96 = scmp.ne.s32.totalorder %s81, %s95
    %p97 = scmp.eq.s32.totalorder %s15, 0
    %p98 = por %p96, %p97
    %s99 = ssub.s32 %s16, %s28
    %s100 = ssub.s32 %s17, %s24
    %s101 = sor.u32 %s99, %s100
    %p102 = scmp.eq.s32.totalorder %s101, 0
    %s104 = sadd.s32 %s103, 1
    %s105 = scalar_select %p102, %s103, %s104
    %p108 = pneg %p102
    %p109 = scmp.eq.s32.totalorder %s9, 1
    %p110 = por %p108, %p109
    %p111 = scmp.ne.s32.totalorder %s103, %s106
    %p112 = scmp.eq.s32.totalorder %s9, 0
    %p113 = por %p111, %p112
    %p114 = scmp.ne.s32.totalorder %s103, %s106
    %p115 = scmp.eq.s32.totalorder %s14, 1
    %p116 = por %p114, %p115
    %p117 = scmp.ne.s32.totalorder %s106, %s107
    %p118 = scmp.eq.s32.totalorder %s14, 0
    %p119 = por %p117, %p118
    %p120 = scmp.ne.s32.totalorder %s106, %s107
    %p121 = scmp.eq.s32.totalorder %s15, 1
    %p122 = por %p120, %p121
    %p124 = scmp.ne.s32.totalorder %s107, %s123
    %p125 = scmp.eq.s32.totalorder %s15, 0
    %p126 = por %p124, %p125
    %p127 = scmp.le.s32.totalorder 1, %s9
    %p128 = scmp.lt.s32.totalorder %s9, 3
    %p129 = pnand %p127, %p128
    %p130 = pneg %p129
    // Predicated region
    $region9: #{tpu_custom_call.1} parent=5 // pred_check
      _
    $region10: #{tpu_custom_call.1} parent=5 // pred_check_branch
      %132 = sbr.rel (%p129) target = $region12
    $region11: #{tpu_custom_call.1} parent=5 // pred_region
      %s133 = ssub.s32 %s9, 1
      // Predicated region
      $region13: #{tpu_custom_call.1} parent=11 // pred_check
        %p134 = pneg %p70
      $region14: #{tpu_custom_call.1} parent=11 // pred_check_branch
        %136 = sbr.rel (%p134) target = $region16
      $region15: #{tpu_custom_call.1} parent=11 // pred_region
        _
      $region16: #{tpu_custom_call.1} parent=11 // pred_fallthru
        _
      // Predicated region
      $region17: #{tpu_custom_call.1} parent=11 // pred_check
        %p137 = pneg %p91
      $region18: #{tpu_custom_call.1} parent=11 // pred_check_branch
        %139 = sbr.rel (%p137) target = $region20
      $region19: #{tpu_custom_call.1} parent=11 // pred_region
        _
      $region20: #{tpu_custom_call.1} parent=11 // pred_fallthru
        _
    $region12: #{tpu_custom_call.1} parent=5 // pred_fallthru
      _
    %p140 = scmp.lt.s32.totalorder %s9, 2
    // Predicated region
    $region21: #{tpu_custom_call.1} parent=5 // pred_check
      %p141 = pneg %p140
    $region22: #{tpu_custom_call.1} parent=5 // pred_check_branch
      %143 = sbr.rel (%p141) target = $region24
    $region23: #{tpu_custom_call.1} parent=5 // pred_region
      // Predicated region
      $region25: #{tpu_custom_call.1} parent=23 // pred_check
        %p144 = pneg %p43
      $region26: #{tpu_custom_call.1} parent=23 // pred_check_branch
        %146 = sbr.rel (%p144) target = $region28
      $region27: #{tpu_custom_call.1} parent=23 // pred_region
        %p147 = scmp.lt.s32.totalorder %s16, 1
        %s148 = scalar_select %p147, %s16, 1
        %p149 = scmp.lt.s32.totalorder %s17, 0
        %s150 = scalar_select %p149, %s17, 0
        %s151 = smul.addr %s150, 54
        %s152 = smul.addr %s148, 54
        %s153 = sadd.s32 %s151, %s152
        %s154 = smul.addr %s153, 8
        %s155 = scalar_lea.vmem %s0, %s154
      $region28: #{tpu_custom_call.1} parent=23 // pred_fallthru
        _
    $region24: #{tpu_custom_call.1} parent=5 // pred_fallthru
      _
    %p156 = scmp.le.s32.totalorder 1, %s9
    %p157 = scmp.lt.s32.totalorder %s9, 3
    %p158 = pnand %p156, %p157
    %p159 = pneg %p158
    // Predicated region
    $region29: #{tpu_custom_call.1} parent=5 // pred_check
      _
    $region30: #{tpu_custom_call.1} parent=5 // pred_check_branch
      %161 = sbr.rel (%p158) target = $region32
    $region31: #{tpu_custom_call.1} parent=5 // pred_region
      %s162 = ssub.s32 %s9, 1
      %p163 = scmp.lt.s32.totalorder %s18, 1
      %s164 = scalar_select %p163, %s18, 1
      %p165 = scmp.lt.s32.totalorder %s19, 0
      %s166 = scalar_select %p165, %s19, 0
      %s167 = smul.addr %s166, 54
      %s168 = smul.addr %s164, 54
      %s169 = sadd.s32 %s167, %s168
      %s170 = smul.addr %s169, 8
      %s171 = scalar_lea.vmem %s0, %s170
      %p172 = pneg %p49
      %p173 = pneg %p46
      %p174 = pneg %p70
      %p175 = pneg %p67
      %p176 = pneg %p91
      %p177 = pneg %p88
      %p178 = pneg %p119
      %p179 = pneg %p116
      %s180 = smul.u32 16, %s19
      %p181 = scmp.lt.s32.totalorder %s18, 1
      %s182 = scalar_select %p181, %s18, 1
      %p183 = scmp.lt.s32.totalorder %s180, 15
      %s184 = scalar_select %p183, %s180, 15
      %s185 = smul.addr %s184, 2
      %s186 = smul.addr %s182, 32
      %s187 = sadd.s32 %s185, %s186
      %s188 = smul.addr %s187, 8
      %s189 = scalar_lea.vmem %s3, %s188
      %p190 = scmp.lt.s32.totalorder %s18, 1
      %s191 = scalar_select %p190, %s18, 1
      %p192 = scmp.lt.s32.totalorder %s19, 0
      %s193 = scalar_select %p192, %s19, 0
      %s194 = smul.addr %s193, 54
      %s195 = smul.addr %s191, 54
      %s196 = sadd.s32 %s194, %s195
      %s197 = smul.addr %s196, 8
      %s198 = scalar_lea.vmem %s0, %s197
      %s199 = smul.u32 16, %s19
      %p200 = scmp.lt.s32.totalorder %s18, 1
      %s201 = scalar_select %p200, %s18, 1
      %p202 = scmp.lt.s32.totalorder %s199, 15
      %s203 = scalar_select %p202, %s199, 15
      %s204 = smul.addr %s203, 2
      %s205 = smul.addr %s201, 32
      %s206 = sadd.s32 %s204, %s205
      %s207 = smul.addr %s206, 8
      %s208 = scalar_lea.vmem %s3, %s207
      %s209 = smul.u32 16, %s19
      %v210 = vld [vmem:[%s198] sm:$0xff]
      %v211 = vld [vmem:[%s198 + $0x8] sm:$0xff]
      %v212 = vld [vmem:[%s198 + $0x18] sm:$0xff]
      %v213 = vld [vmem:[%s198 + $0x20] sm:$0xff]
      %v214 = vld [vmem:[%s198 + $0x30] sm:$0xff]
      %v215 = vld [vmem:[%s198 + $0x38] sm:$0xff]
      %v216 = vld [vmem:[%s198 + $0x48] sm:$0xff]
      %v217 = vld [vmem:[%s198 + $0x50] sm:$0xff]
      %v218 = vld [vmem:[%s198 + $0x60] sm:$0xff]
      %v219 = vld [vmem:[%s198 + $0x68] sm:$0xff]
      %v220 = vld [vmem:[%s198 + $0x78] sm:$0xff]
      %v221 = vld [vmem:[%s198 + $0x80] sm:$0xff]
      %v222 = vld [vmem:[%s198 + $0x90] sm:$0xff]
      %v223 = vld [vmem:[%s198 + $0x98] sm:$0xff]
      %v224 = vld [vmem:[%s198 + $0xa8] sm:$0xff]
      %v225 = vld [vmem:[%s198 + $0xb0] sm:$0xff]
      %v226 = vld [vmem:[%s198 + $0xc0] sm:$0xff]
      %v227 = vld [vmem:[%s198 + $0xc8] sm:$0xff]
      %v228 = vld [vmem:[%s198 + $0xd8] sm:$0xff]
      %v229 = vld [vmem:[%s198 + $0xe0] sm:$0xff]
      %v230 = vld [vmem:[%s198 + $0xf0] sm:$0xff]
      %v231 = vld [vmem:[%s198 + $0xf8] sm:$0xff]
      %v232 = vld [vmem:[%s198 + $0x108] sm:$0xff]
      %v233 = vld [vmem:[%s198 + $0x110] sm:$0xff]
      %v234 = vld [vmem:[%s198 + $0x120] sm:$0xff]
      %v235 = vld [vmem:[%s198 + $0x128] sm:$0xff]
      %v236 = vld [vmem:[%s198 + $0x138] sm:$0xff]
      %v237 = vld [vmem:[%s198 + $0x140] sm:$0xff]
      %v238 = vld [vmem:[%s198 + $0x150] sm:$0xff]
      %v239 = vld [vmem:[%s198 + $0x158] sm:$0xff]
      %v240 = vld [vmem:[%s198 + $0x168] sm:$0xff]
      %v241 = vld [vmem:[%s198 + $0x170] sm:$0xff]
      %vm242 = vcmask 31744
      %243 = vst.msk [vmem:[#allocation2] sm:$0xff] %vm242, %v210
      %244 = vst.msk [vmem:[#allocation2 + $0x8] sm:$0xff] %vm242, %v211
      %245 = vst.msk [vmem:[#allocation2 + $0x10] sm:$0xff] %vm242, %v212
      %246 = vst.msk [vmem:[#allocation2 + $0x18] sm:$0xff] %vm242, %v213
      %247 = vst.msk [vmem:[#allocation2 + $0x20] sm:$0xff] %vm242, %v214
      %248 = vst.msk [vmem:[#allocation2 + $0x28] sm:$0xff] %vm242, %v215
      %249 = vst.msk [vmem:[#allocation2 + $0x30] sm:$0xff] %vm242, %v216
      %250 = vst.msk [vmem:[#allocation2 + $0x38] sm:$0xff] %vm242, %v217
      %251 = vst.msk [vmem:[#allocation2 + $0x40] sm:$0xff] %vm242, %v218
      %252 = vst.msk [vmem:[#allocation2 + $0x48] sm:$0xff] %vm242, %v219
      %253 = vst.msk [vmem:[#allocation2 + $0x50] sm:$0xff] %vm242, %v220
      %254 = vst.msk [vmem:[#allocation2 + $0x58] sm:$0xff] %vm242, %v221
      %255 = vst.msk [vmem:[#allocation2 + $0x60] sm:$0xff] %vm242, %v222
      %256 = vst.msk [vmem:[#allocation2 + $0x68] sm:$0xff] %vm242, %v223
      %257 = vst.msk [vmem:[#allocation2 + $0x70] sm:$0xff] %vm242, %v224
      %258 = vst.msk [vmem:[#allocation2 + $0x78] sm:$0xff] %vm242, %v225
      %259 = vst.msk [vmem:[#allocation2 + $0x80] sm:$0xff] %vm242, %v226
      %260 = vst.msk [vmem:[#allocation2 + $0x88] sm:$0xff] %vm242, %v227
      %261 = vst.msk [vmem:[#allocation2 + $0x90] sm:$0xff] %vm242, %v228
      %262 = vst.msk [vmem:[#allocation2 + $0x98] sm:$0xff] %vm242, %v229
      %263 = vst.msk [vmem:[#allocation2 + $0xa0] sm:$0xff] %vm242, %v230
      %264 = vst.msk [vmem:[#allocation2 + $0xa8] sm:$0xff] %vm242, %v231
      %265 = vst.msk [vmem:[#allocation2 + $0xb0] sm:$0xff] %vm242, %v232
      %266 = vst.msk [vmem:[#allocation2 + $0xb8] sm:$0xff] %vm242, %v233
      %267 = vst.msk [vmem:[#allocation2 + $0xc0] sm:$0xff] %vm242, %v234
      %268 = vst.msk [vmem:[#allocation2 + $0xc8] sm:$0xff] %vm242, %v235
      %269 = vst.msk [vmem:[#allocation2 + $0xd0] sm:$0xff] %vm242, %v236
      %270 = vst.msk [vmem:[#allocation2 + $0xd8] sm:$0xff] %vm242, %v237
      %271 = vst.msk [vmem:[#allocation2 + $0xe0] sm:$0xff] %vm242, %v238
      %272 = vst.msk [vmem:[#allocation2 + $0xe8] sm:$0xff] %vm242, %v239
      %273 = vst.msk [vmem:[#allocation2 + $0xf0] sm:$0xff] %vm242, %v240
      %274 = vst.msk [vmem:[#allocation2 + $0xf8] sm:$0xff] %vm242, %v241
      %v275 = vld [vmem:[%s198 + $0x1] sm:$0xff]
      %v276 = vld [vmem:[%s198 + $0x9] sm:$0xff]
      %v277 = vld [vmem:[%s198 + $0x19] sm:$0xff]
      %v278 = vld [vmem:[%s198 + $0x21] sm:$0xff]
      %v279 = vld [vmem:[%s198 + $0x31] sm:$0xff]
      %v280 = vld [vmem:[%s198 + $0x39] sm:$0xff]
      %v281 = vld [vmem:[%s198 + $0x49] sm:$0xff]
      %v282 = vld [vmem:[%s198 + $0x51] sm:$0xff]
      %v283 = vld [vmem:[%s198 + $0x61] sm:$0xff]
      %v284 = vld [vmem:[%s198 + $0x69] sm:$0xff]
      %v285 = vld [vmem:[%s198 + $0x79] sm:$0xff]
      %v286 = vld [vmem:[%s198 + $0x81] sm:$0xff]
      %v287 = vld [vmem:[%s198 + $0x91] sm:$0xff]
      %v288 = vld [vmem:[%s198 + $0x99] sm:$0xff]
      %v289 = vld [vmem:[%s198 + $0xa9] sm:$0xff]
      %v290 = vld [vmem:[%s198 + $0xb1] sm:$0xff]
      %v291 = vld [vmem:[%s198 + $0xc1] sm:$0xff]
      %v292 = vld [vmem:[%s198 + $0xc9] sm:$0xff]
      %v293 = vld [vmem:[%s198 + $0xd9] sm:$0xff]
      %v294 = vld [vmem:[%s198 + $0xe1] sm:$0xff]
      %v295 = vld [vmem:[%s198 + $0xf1] sm:$0xff]
      %v296 = vld [vmem:[%s198 + $0xf9] sm:$0xff]
      %v297 = vld [vmem:[%s198 + $0x109] sm:$0xff]
      %v298 = vld [vmem:[%s198 + $0x111] sm:$0xff]
      %v299 = vld [vmem:[%s198 + $0x121] sm:$0xff]
      %v300 = vld [vmem:[%s198 + $0x129] sm:$0xff]
      %v301 = vld [vmem:[%s198 + $0x139] sm:$0xff]
      %v302 = vld [vmem:[%s198 + $0x141] sm:$0xff]
      %v303 = vld [vmem:[%s198 + $0x151] sm:$0xff]
      %v304 = vld [vmem:[%s198 + $0x159] sm:$0xff]
      %v305 = vld [vmem:[%s198 + $0x169] sm:$0xff]
      %v306 = vld [vmem:[%s198 + $0x171] sm:$0xff]
      %339 = vrot.lane.b32.xlu0 %v275, 4
      %v340 = vpop.permute.xlu0 %339
      %341 = vrot.lane.b32.xlu0 %v276, 4
      %v342 = vpop.permute.xlu0 %341
      %343 = vrot.lane.b32.xlu0 %v277, 4
      %v344 = vpop.permute.xlu0 %343
      %345 = vrot.lane.b32.xlu0 %v278, 4
      %v346 = vpop.permute.xlu0 %345
      %347 = vrot.lane.b32.xlu0 %v279, 4
      %v348 = vpop.permute.xlu0 %347
      %349 = vrot.lane.b32.xlu0 %v280, 4
      %v350 = vpop.permute.xlu0 %349
      %351 = vrot.lane.b32.xlu0 %v281, 4
      %v352 = vpop.permute.xlu0 %351
      %353 = vrot.lane.b32.xlu0 %v282, 4
      %v354 = vpop.permute.xlu0 %353
      %355 = vrot.lane.b32.xlu0 %v283, 4
      %v356 = vpop.permute.xlu0 %355
      %357 = vrot.lane.b32.xlu0 %v284, 4
      %v358 = vpop.permute.xlu0 %357
      %359 = vrot.lane.b32.xlu0 %v285, 4
      %v360 = vpop.permute.xlu0 %359
      %361 = vrot.lane.b32.xlu0 %v286, 4
      %v362 = vpop.permute.xlu0 %361
      %363 = vrot.lane.b32.xlu0 %v287, 4
      %v364 = vpop.permute.xlu0 %363
      %365 = vrot.lane.b32.xlu0 %v288, 4
      %v366 = vpop.permute.xlu0 %365
      %367 = vrot.lane.b32.xlu0 %v289, 4
      %v368 = vpop.permute.xlu0 %367
      %369 = vrot.lane.b32.xlu0 %v290, 4
      %v370 = vpop.permute.xlu0 %369
      %371 = vrot.lane.b32.xlu0 %v291, 4
      %v372 = vpop.permute.xlu0 %371
      %373 = vrot.lane.b32.xlu0 %v292, 4
      %v374 = vpop.permute.xlu0 %373
      %375 = vrot.lane.b32.xlu0 %v293, 4
      %v376 = vpop.permute.xlu0 %375
      %377 = vrot.lane.b32.xlu0 %v294, 4
      %v378 = vpop.permute.xlu0 %377
      %379 = vrot.lane.b32.xlu0 %v295, 4
      %v380 = vpop.permute.xlu0 %379
      %381 = vrot.lane.b32.xlu0 %v296, 4
      %v382 = vpop.permute.xlu0 %381
      %383 = vrot.lane.b32.xlu0 %v297, 4
      %v384 = vpop.permute.xlu0 %383
      %385 = vrot.lane.b32.xlu0 %v298, 4
      %v386 = vpop.permute.xlu0 %385
      %387 = vrot.lane.b32.xlu0 %v299, 4
      %v388 = vpop.permute.xlu0 %387
      %389 = vrot.lane.b32.xlu0 %v300, 4
      %v390 = vpop.permute.xlu0 %389
      %391 = vrot.lane.b32.xlu0 %v301, 4
      %v392 = vpop.permute.xlu0 %391
      %393 = vrot.lane.b32.xlu0 %v302, 4
      %v394 = vpop.permute.xlu0 %393
      %395 = vrot.lane.b32.xlu0 %v303, 4
      %v396 = vpop.permute.xlu0 %395
      %397 = vrot.lane.b32.xlu0 %v304, 4
      %v398 = vpop.permute.xlu0 %397
      %399 = vrot.lane.b32.xlu0 %v305, 4
      %v400 = vpop.permute.xlu0 %399
      %401 = vrot.lane.b32.xlu0 %v306, 4
      %v402 = vpop.permute.xlu0 %401
      %vm435 = vcmask 64544
      %436 = vst.msk [vmem:[#allocation2] sm:$0xff] %vm435, %v340
      %437 = vst.msk [vmem:[#allocation2 + $0x8] sm:$0xff] %vm435, %v342
      %438 = vst.msk [vmem:[#allocation2 + $0x10] sm:$0xff] %vm435, %v344
      %439 = vst.msk [vmem:[#allocation2 + $0x18] sm:$0xff] %vm435, %v346
      %440 = vst.msk [vmem:[#allocation2 + $0x20] sm:$0xff] %vm435, %v348
      %441 = vst.msk [vmem:[#allocation2 + $0x28] sm:$0xff] %vm435, %v350
      %442 = vst.msk [vmem:[#allocation2 + $0x30] sm:$0xff] %vm435, %v352
      %443 = vst.msk [vmem:[#allocation2 + $0x38] sm:$0xff] %vm435, %v354
      %444 = vst.msk [vmem:[#allocation2 + $0x40] sm:$0xff] %vm435, %v356
      %445 = vst.msk [vmem:[#allocation2 + $0x48] sm:$0xff] %vm435, %v358
      %446 = vst.msk [vmem:[#allocation2 + $0x50] sm:$0xff] %vm435, %v360
      %447 = vst.msk [vmem:[#allocation2 + $0x58] sm:$0xff] %vm435, %v362
      %448 = vst.msk [vmem:[#allocation2 + $0x60] sm:$0xff] %vm435, %v364
      %449 = vst.msk [vmem:[#allocation2 + $0x68] sm:$0xff] %vm435, %v366
      %450 = vst.msk [vmem:[#allocation2 + $0x70] sm:$0xff] %vm435, %v368
      %451 = vst.msk [vmem:[#allocation2 + $0x78] sm:$0xff] %vm435, %v370
      %452 = vst.msk [vmem:[#allocation2 + $0x80] sm:$0xff] %vm435, %v372
      %453 = vst.msk [vmem:[#allocation2 + $0x88] sm:$0xff] %vm435, %v374
      %454 = vst.msk [vmem:[#allocation2 + $0x90] sm:$0xff] %vm435, %v376
      %455 = vst.msk [vmem:[#allocation2 + $0x98] sm:$0xff] %vm435, %v378
      %456 = vst.msk [vmem:[#allocation2 + $0xa0] sm:$0xff] %vm435, %v380
      %457 = vst.msk [vmem:[#allocation2 + $0xa8] sm:$0xff] %vm435, %v382
      %458 = vst.msk [vmem:[#allocation2 + $0xb0] sm:$0xff] %vm435, %v384
      %459 = vst.msk [vmem:[#allocation2 + $0xb8] sm:$0xff] %vm435, %v386
      %460 = vst.msk [vmem:[#allocation2 + $0xc0] sm:$0xff] %vm435, %v388
      %461 = vst.msk [vmem:[#allocation2 + $0xc8] sm:$0xff] %vm435, %v390
      %462 = vst.msk [vmem:[#allocation2 + $0xd0] sm:$0xff] %vm435, %v392
      %463 = vst.msk [vmem:[#allocation2 + $0xd8] sm:$0xff] %vm435, %v394
      %464 = vst.msk [vmem:[#allocation2 + $0xe0] sm:$0xff] %vm435, %v396
      %465 = vst.msk [vmem:[#allocation2 + $0xe8] sm:$0xff] %vm435, %v398
      %466 = vst.msk [vmem:[#allocation2 + $0xf0] sm:$0xff] %vm435, %v400
      %467 = vst.msk [vmem:[#allocation2 + $0xf8] sm:$0xff] %vm435, %v402
      %v468 = vld [vmem:[%s198 + $0x2] sm:$0xff]
      %v469 = vld [vmem:[%s198 + $0xa] sm:$0xff]
      %v470 = vld [vmem:[%s198 + $0x1a] sm:$0xff]
      %v471 = vld [vmem:[%s198 + $0x22] sm:$0xff]
      %v472 = vld [vmem:[%s198 + $0x32] sm:$0xff]
      %v473 = vld [vmem:[%s198 + $0x3a] sm:$0xff]
      %v474 = vld [vmem:[%s198 + $0x4a] sm:$0xff]
      %v475 = vld [vmem:[%s198 + $0x52] sm:$0xff]
      %v476 = vld [vmem:[%s198 + $0x62] sm:$0xff]
      %v477 = vld [vmem:[%s198 + $0x6a] sm:$0xff]
      %v478 = vld [vmem:[%s198 + $0x7a] sm:$0xff]
      %v479 = vld [vmem:[%s198 + $0x82] sm:$0xff]
      %v480 = vld [vmem:[%s198 + $0x92] sm:$0xff]
      %v481 = vld [vmem:[%s198 + $0x9a] sm:$0xff]
      %v482 = vld [vmem:[%s198 + $0xaa] sm:$0xff]
      %v483 = vld [vmem:[%s198 + $0xb2] sm:$0xff]
      %v484 = vld [vmem:[%s198 + $0xc2] sm:$0xff]
      %v485 = vld [vmem:[%s198 + $0xca] sm:$0xff]
      %v486 = vld [vmem:[%s198 + $0xda] sm:$0xff]
      %v487 = vld [vmem:[%s198 + $0xe2] sm:$0xff]
      %v488 = vld [vmem:[%s198 + $0xf2] sm:$0xff]
      %v489 = vld [vmem:[%s198 + $0xfa] sm:$0xff]
      %v490 = vld [vmem:[%s198 + $0x10a] sm:$0xff]
      %v491 = vld [vmem:[%s198 + $0x112] sm:$0xff]
      %v492 = vld [vmem:[%s198 + $0x122] sm:$0xff]
      %v493 = vld [vmem:[%s198 + $0x12a] sm:$0xff]
      %v494 = vld [vmem:[%s198 + $0x13a] sm:$0xff]
      %v495 = vld [vmem:[%s198 + $0x142] sm:$0xff]
      %v496 = vld [vmem:[%s198 + $0x152] sm:$0xff]
      %v497 = vld [vmem:[%s198 + $0x15a] sm:$0xff]
      %v498 = vld [vmem:[%s198 + $0x16a] sm:$0xff]
      %v499 = vld [vmem:[%s198 + $0x172] sm:$0xff]
      %532 = vrot.lane.b32.xlu0 %v468, 8
      %v533 = vpop.permute.xlu0 %532
      %534 = vrot.lane.b32.xlu0 %v469, 8
      %v535 = vpop.permute.xlu0 %534
      %536 = vrot.lane.b32.xlu0 %v470, 8
      %v537 = vpop.permute.xlu0 %536
      %538 = vrot.lane.b32.xlu0 %v471, 8
      %v539 = vpop.permute.xlu0 %538
      %540 = vrot.lane.b32.xlu0 %v472, 8
      %v541 = vpop.permute.xlu0 %540
      %542 = vrot.lane.b32.xlu0 %v473, 8
      %v543 = vpop.permute.xlu0 %542
      %544 = vrot.lane.b32.xlu0 %v474, 8
      %v545 = vpop.permute.xlu0 %544
      %546 = vrot.lane.b32.xlu0 %v475, 8
      %v547 = vpop.permute.xlu0 %546
      %548 = vrot.lane.b32.xlu0 %v476, 8
      %v549 = vpop.permute.xlu0 %548
      %550 = vrot.lane.b32.xlu0 %v477, 8
      %v551 = vpop.permute.xlu0 %550
      %552 = vrot.lane.b32.xlu0 %v478, 8
      %v553 = vpop.permute.xlu0 %552
      %554 = vrot.lane.b32.xlu0 %v479, 8
      %v555 = vpop.permute.xlu0 %554
      %556 = vrot.lane.b32.xlu0 %v480, 8
      %v557 = vpop.permute.xlu0 %556
      %558 = vrot.lane.b32.xlu0 %v481, 8
      %v559 = vpop.permute.xlu0 %558
      %560 = vrot.lane.b32.xlu0 %v482, 8
      %v561 = vpop.permute.xlu0 %560
      %562 = vrot.lane.b32.xlu0 %v483, 8
      %v563 = vpop.permute.xlu0 %562
      %564 = vrot.lane.b32.xlu0 %v484, 8
      %v565 = vpop.permute.xlu0 %564
      %566 = vrot.lane.b32.xlu0 %v485, 8
      %v567 = vpop.permute.xlu0 %566
      %568 = vrot.lane.b32.xlu0 %v486, 8
      %v569 = vpop.permute.xlu0 %568
      %570 = vrot.lane.b32.xlu0 %v487, 8
      %v571 = vpop.permute.xlu0 %570
      %572 = vrot.lane.b32.xlu0 %v488, 8
      %v573 = vpop.permute.xlu0 %572
      %574 = vrot.lane.b32.xlu0 %v489, 8
      %v575 = vpop.permute.xlu0 %574
      %576 = vrot.lane.b32.xlu0 %v490, 8
      %v577 = vpop.permute.xlu0 %576
      %578 = vrot.lane.b32.xlu0 %v491, 8
      %v579 = vpop.permute.xlu0 %578
      %580 = vrot.lane.b32.xlu0 %v492, 8
      %v581 = vpop.permute.xlu0 %580
      %582 = vrot.lane.b32.xlu0 %v493, 8
      %v583 = vpop.permute.xlu0 %582
      %584 = vrot.lane.b32.xlu0 %v494, 8
      %v585 = vpop.permute.xlu0 %584
      %586 = vrot.lane.b32.xlu0 %v495, 8
      %v587 = vpop.permute.xlu0 %586
      %588 = vrot.lane.b32.xlu0 %v496, 8
      %v589 = vpop.permute.xlu0 %588
      %590 = vrot.lane.b32.xlu0 %v497, 8
      %v591 = vpop.permute.xlu0 %590
      %592 = vrot.lane.b32.xlu0 %v498, 8
      %v593 = vpop.permute.xlu0 %592
      %594 = vrot.lane.b32.xlu0 %v499, 8
      %v595 = vpop.permute.xlu0 %594
      %vm628 = vcmask 97344
      %629 = vst.msk [vmem:[#allocation2] sm:$0xff] %vm628, %v533
      %630 = vst.msk [vmem:[#allocation2 + $0x8] sm:$0xff] %vm628, %v535
      %631 = vst.msk [vmem:[#allocation2 + $0x10] sm:$0xff] %vm628, %v537
      %632 = vst.msk [vmem:[#allocation2 + $0x18] sm:$0xff] %vm628, %v539
      %633 = vst.msk [vmem:[#allocation2 + $0x20] sm:$0xff] %vm628, %v541
      %634 = vst.msk [vmem:[#allocation2 + $0x28] sm:$0xff] %vm628, %v543
      %635 = vst.msk [vmem:[#allocation2 + $0x30] sm:$0xff] %vm628, %v545
      %636 = vst.msk [vmem:[#allocation2 + $0x38] sm:$0xff] %vm628, %v547
      %637 = vst.msk [vmem:[#allocation2 + $0x40] sm:$0xff] %vm628, %v549
      %638 = vst.msk [vmem:[#allocation2 + $0x48] sm:$0xff] %vm628, %v551
      %639 = vst.msk [vmem:[#allocation2 + $0x50] sm:$0xff] %vm628, %v553
      %640 = vst.msk [vmem:[#allocation2 + $0x58] sm:$0xff] %vm628, %v555
      %641 = vst.msk [vmem:[#allocation2 + $0x60] sm:$0xff] %vm628, %v557
      %642 = vst.msk [vmem:[#allocation2 + $0x68] sm:$0xff] %vm628, %v559
      %643 = vst.msk [vmem:[#allocation2 + $0x70] sm:$0xff] %vm628, %v561
      %644 = vst.msk [vmem:[#allocation2 + $0x78] sm:$0xff] %vm628, %v563
      %645 = vst.msk [vmem:[#allocation2 + $0x80] sm:$0xff] %vm628, %v565
      %646 = vst.msk [vmem:[#allocation2 + $0x88] sm:$0xff] %vm628, %v567
      %647 = vst.msk [vmem:[#allocation2 + $0x90] sm:$0xff] %vm628, %v569
      %648 = vst.msk [vmem:[#allocation2 + $0x98] sm:$0xff] %vm628, %v571
      %649 = vst.msk [vmem:[#allocation2 + $0xa0] sm:$0xff] %vm628, %v573
      %650 = vst.msk [vmem:[#allocation2 + $0xa8] sm:$0xff] %vm628, %v575
      %651 = vst.msk [vmem:[#allocation2 + $0xb0] sm:$0xff] %vm628, %v577
      %652 = vst.msk [vmem:[#allocation2 + $0xb8] sm:$0xff] %vm628, %v579
      %653 = vst.msk [vmem:[#allocation2 + $0xc0] sm:$0xff] %vm628, %v581
      %654 = vst.msk [vmem:[#allocation2 + $0xc8] sm:$0xff] %vm628, %v583
      %655 = vst.msk [vmem:[#allocation2 + $0xd0] sm:$0xff] %vm628, %v585
      %656 = vst.msk [vmem:[#allocation2 + $0xd8] sm:$0xff] %vm628, %v587
      %657 = vst.msk [vmem:[#allocation2 + $0xe0] sm:$0xff] %vm628, %v589
      %658 = vst.msk [vmem:[#allocation2 + $0xe8] sm:$0xff] %vm628, %v591
      %659 = vst.msk [vmem:[#allocation2 + $0xf0] sm:$0xff] %vm628, %v593
      %660 = vst.msk [vmem:[#allocation2 + $0xf8] sm:$0xff] %vm628, %v595
      %s661 = scalar_lea.vmem %s198, 24
      %v662 = vld [vmem:[%s661] sm:$0xff]
      %v663 = vld [vmem:[%s661 + $0x8] sm:$0xff]
      %v664 = vld [vmem:[%s661 + $0x18] sm:$0xff]
      %v665 = vld [vmem:[%s661 + $0x20] sm:$0xff]
      %v666 = vld [vmem:[%s661 + $0x30] sm:$0xff]
      %v667 = vld [vmem:[%s661 + $0x38] sm:$0xff]
      %v668 = vld [vmem:[%s661 + $0x48] sm:$0xff]
      %v669 = vld [vmem:[%s661 + $0x50] sm:$0xff]
      %v670 = vld [vmem:[%s661 + $0x60] sm:$0xff]
      %v671 = vld [vmem:[%s661 + $0x68] sm:$0xff]
      %v672 = vld [vmem:[%s661 + $0x78] sm:$0xff]
      %v673 = vld [vmem:[%s661 + $0x80] sm:$0xff]
      %v674 = vld [vmem:[%s661 + $0x90] sm:$0xff]
      %v675 = vld [vmem:[%s661 + $0x98] sm:$0xff]
      %v676 = vld [vmem:[%s661 + $0xa8] sm:$0xff]
      %v677 = vld [vmem:[%s661 + $0xb0] sm:$0xff]
      %v678 = vld [vmem:[%s661 + $0xc0] sm:$0xff]
      %v679 = vld [vmem:[%s661 + $0xc8] sm:$0xff]
      %v680 = vld [vmem:[%s661 + $0xd8] sm:$0xff]
      %v681 = vld [vmem:[%s661 + $0xe0] sm:$0xff]
      %v682 = vld [vmem:[%s661 + $0xf0] sm:$0xff]
      %v683 = vld [vmem:[%s661 + $0xf8] sm:$0xff]
      %v684 = vld [vmem:[%s661 + $0x108] sm:$0xff]
      %v685 = vld [vmem:[%s661 + $0x110] sm:$0xff]
      %v686 = vld [vmem:[%s661 + $0x120] sm:$0xff]
      %v687 = vld [vmem:[%s661 + $0x128] sm:$0xff]
      %v688 = vld [vmem:[%s661 + $0x138] sm:$0xff]
      %v689 = vld [vmem:[%s661 + $0x140] sm:$0xff]
      %v690 = vld [vmem:[%s661 + $0x150] sm:$0xff]
      %v691 = vld [vmem:[%s661 + $0x158] sm:$0xff]
      %v692 = vld [vmem:[%s661 + $0x168] sm:$0xff]
      %v693 = vld [vmem:[%s661 + $0x170] sm:$0xff]
      %726 = vrot.lane.b32.xlu0 %v662, 12
      %v727 = vpop.permute.xlu0 %726
      %728 = vrot.lane.b32.xlu0 %v663, 12
      %v729 = vpop.permute.xlu0 %728
      %730 = vrot.lane.b32.xlu0 %v664, 12
      %v731 = vpop.permute.xlu0 %730
      %732 = vrot.lane.b32.xlu0 %v665, 12
      %v733 = vpop.permute.xlu0 %732
      %734 = vrot.lane.b32.xlu0 %v666, 12
      %v735 = vpop.permute.xlu0 %734
      %736 = vrot.lane.b32.xlu0 %v667, 12
      %v737 = vpop.permute.xlu0 %736
      %738 = vrot.lane.b32.xlu0 %v668, 12
      %v739 = vpop.permute.xlu0 %738
      %740 = vrot.lane.b32.xlu0 %v669, 12
      %v741 = vpop.permute.xlu0 %740
      %742 = vrot.lane.b32.xlu0 %v670, 12
      %v743 = vpop.permute.xlu0 %742
      %744 = vrot.lane.b32.xlu0 %v671, 12
      %v745 = vpop.permute.xlu0 %744
      %746 = vrot.lane.b32.xlu0 %v672, 12
      %v747 = vpop.permute.xlu0 %746
      %748 = vrot.lane.b32.xlu0 %v673, 12
      %v749 = vpop.permute.xlu0 %748
      %750 = vrot.lane.b32.xlu0 %v674, 12
      %v751 = vpop.permute.xlu0 %750
      %752 = vrot.lane.b32.xlu0 %v675, 12
      %v753 = vpop.permute.xlu0 %752
      %754 = vrot.lane.b32.xlu0 %v676, 12
      %v755 = vpop.permute.xlu0 %754
      %756 = vrot.lane.b32.xlu0 %v677, 12
      %v757 = vpop.permute.xlu0 %756
      %758 = vrot.lane.b32.xlu0 %v678, 12
      %v759 = vpop.permute.xlu0 %758
      %760 = vrot.lane.b32.xlu0 %v679, 12
      %v761 = vpop.permute.xlu0 %760
      %762 = vrot.lane.b32.xlu0 %v680, 12
      %v763 = vpop.permute.xlu0 %762
      %764 = vrot.lane.b32.xlu0 %v681, 12
      %v765 = vpop.permute.xlu0 %764
      %766 = vrot.lane.b32.xlu0 %v682, 12
      %v767 = vpop.permute.xlu0 %766
      %768 = vrot.lane.b32.xlu0 %v683, 12
      %v769 = vpop.permute.xlu0 %768
      %770 = vrot.lane.b32.xlu0 %v684, 12
      %v771 = vpop.permute.xlu0 %770
      %772 = vrot.lane.b32.xlu0 %v685, 12
      %v773 = vpop.permute.xlu0 %772
      %774 = vrot.lane.b32.xlu0 %v686, 12
      %v775 = vpop.permute.xlu0 %774
      %776 = vrot.lane.b32.xlu0 %v687, 12
      %v777 = vpop.permute.xlu0 %776
      %778 = vrot.lane.b32.xlu0 %v688, 12
      %v779 = vpop.permute.xlu0 %778
      %780 = vrot.lane.b32.xlu0 %v689, 12
      %v781 = vpop.permute.xlu0 %780
      %782 = vrot.lane.b32.xlu0 %v690, 12
      %v783 = vpop.permute.xlu0 %782
      %784 = vrot.lane.b32.xlu0 %v691, 12
      %v785 = vpop.permute.xlu0 %784
      %786 = vrot.lane.b32.xlu0 %v692, 12
      %v787 = vpop.permute.xlu0 %786
      %788 = vrot.lane.b32.xlu0 %v693, 12
      %v789 = vpop.permute.xlu0 %788
      %vm822 = vcmask 130144
      %823 = vst.msk [vmem:[#allocation2] sm:$0xff] %vm822, %v727
      %824 = vst.msk [vmem:[#allocation2 + $0x8] sm:$0xff] %vm822, %v729
      %825 = vst.msk [vmem:[#allocation2 + $0x10] sm:$0xff] %vm822, %v731
      %826 = vst.msk [vmem:[#allocation2 + $0x18] sm:$0xff] %vm822, %v733
      %827 = vst.msk [vmem:[#allocation2 + $0x20] sm:$0xff] %vm822, %v735
      %828 = vst.msk [vmem:[#allocation2 + $0x28] sm:$0xff] %vm822, %v737
      %829 = vst.msk [vmem:[#allocation2 + $0x30] sm:$0xff] %vm822, %v739
      %830 = vst.msk [vmem:[#allocation2 + $0x38] sm:$0xff] %vm822, %v741
      %831 = vst.msk [vmem:[#allocation2 + $0x40] sm:$0xff] %vm822, %v743
      %832 = vst.msk [vmem:[#allocation2 + $0x48] sm:$0xff] %vm822, %v745
      %833 = vst.msk [vmem:[#allocation2 + $0x50] sm:$0xff] %vm822, %v747
      %834 = vst.msk [vmem:[#allocation2 + $0x58] sm:$0xff] %vm822, %v749
      %835 = vst.msk [vmem:[#allocation2 + $0x60] sm:$0xff] %vm822, %v751
      %836 = vst.msk [vmem:[#allocation2 + $0x68] sm:$0xff] %vm822, %v753
      %837 = vst.msk [vmem:[#allocation2 + $0x70] sm:$0xff] %vm822, %v755
      %838 = vst.msk [vmem:[#allocation2 + $0x78] sm:$0xff] %vm822, %v757
      %839 = vst.msk [vmem:[#allocation2 + $0x80] sm:$0xff] %vm822, %v759
      %840 = vst.msk [vmem:[#allocation2 + $0x88] sm:$0xff] %vm822, %v761
      %841 = vst.msk [vmem:[#allocation2 + $0x90] sm:$0xff] %vm822, %v763
      %842 = vst.msk [vmem:[#allocation2 + $0x98] sm:$0xff] %vm822, %v765
      %843 = vst.msk [vmem:[#allocation2 + $0xa0] sm:$0xff] %vm822, %v767
      %844 = vst.msk [vmem:[#allocation2 + $0xa8] sm:$0xff] %vm822, %v769
      %845 = vst.msk [vmem:[#allocation2 + $0xb0] sm:$0xff] %vm822, %v771
      %846 = vst.msk [vmem:[#allocation2 + $0xb8] sm:$0xff] %vm822, %v773
      %847 = vst.msk [vmem:[#allocation2 + $0xc0] sm:$0xff] %vm822, %v775
      %848 = vst.msk [vmem:[#allocation2 + $0xc8] sm:$0xff] %vm822, %v777
      %849 = vst.msk [vmem:[#allocation2 + $0xd0] sm:$0xff] %vm822, %v779
      %850 = vst.msk [vmem:[#allocation2 + $0xd8] sm:$0xff] %vm822, %v781
      %851 = vst.msk [vmem:[#allocation2 + $0xe0] sm:$0xff] %vm822, %v783
      %852 = vst.msk [vmem:[#allocation2 + $0xe8] sm:$0xff] %vm822, %v785
      %853 = vst.msk [vmem:[#allocation2 + $0xf0] sm:$0xff] %vm822, %v787
      %854 = vst.msk [vmem:[#allocation2 + $0xf8] sm:$0xff] %vm822, %v789
      %v855 = vld [vmem:[%s661 + $0x1] sm:$0xff]
      %v856 = vld [vmem:[%s661 + $0x9] sm:$0xff]
      %v857 = vld [vmem:[%s661 + $0x19] sm:$0xff]
      %v858 = vld [vmem:[%s661 + $0x21] sm:$0xff]
      %v859 = vld [vmem:[%s661 + $0x31] sm:$0xff]
      %v860 = vld [vmem:[%s661 + $0x39] sm:$0xff]
      %v861 = vld [vmem:[%s661 + $0x49] sm:$0xff]
      %v862 = vld [vmem:[%s661 + $0x51] sm:$0xff]
      %v863 = vld [vmem:[%s661 + $0x61] sm:$0xff]
      %v864 = vld [vmem:[%s661 + $0x69] sm:$0xff]
      %v865 = vld [vmem:[%s661 + $0x79] sm:$0xff]
      %v866 = vld [vmem:[%s661 + $0x81] sm:$0xff]
      %v867 = vld [vmem:[%s661 + $0x91] sm:$0xff]
      %v868 = vld [vmem:[%s661 + $0x99] sm:$0xff]
      %v869 = vld [vmem:[%s661 + $0xa9] sm:$0xff]
      %v870 = vld [vmem:[%s661 + $0xb1] sm:$0xff]
      %v871 = vld [vmem:[%s661 + $0xc1] sm:$0xff]
      %v872 = vld [vmem:[%s661 + $0xc9] sm:$0xff]
      %v873 = vld [vmem:[%s661 + $0xd9] sm:$0xff]
      %v874 = vld [vmem:[%s661 + $0xe1] sm:$0xff]
      %v875 = vld [vmem:[%s661 + $0xf1] sm:$0xff]
      %v876 = vld [vmem:[%s661 + $0xf9] sm:$0xff]
      %v877 = vld [vmem:[%s661 + $0x109] sm:$0xff]
      %v878 = vld [vmem:[%s661 + $0x111] sm:$0xff]
      %v879 = vld [vmem:[%s661 + $0x121] sm:$0xff]
      %v880 = vld [vmem:[%s661 + $0x129] sm:$0xff]
      %v881 = vld [vmem:[%s661 + $0x139] sm:$0xff]
      %v882 = vld [vmem:[%s661 + $0x141] sm:$0xff]
      %v883 = vld [vmem:[%s661 + $0x151] sm:$0xff]
      %v884 = vld [vmem:[%s661 + $0x159] sm:$0xff]
      %v885 = vld [vmem:[%s661 + $0x169] sm:$0xff]
      %v886 = vld [vmem:[%s661 + $0x171] sm:$0xff]
      %919 = vrot.lane.b32.xlu0 %v855, 16
      %v920 = vpop.permute.xlu0 %919
      %921 = vrot.lane.b32.xlu0 %v856, 16
      %v922 = vpop.permute.xlu0 %921
      %923 = vrot.lane.b32.xlu0 %v857, 16
      %v924 = vpop.permute.xlu0 %923
      %925 = vrot.lane.b32.xlu0 %v858, 16
      %v926 = vpop.permute.xlu0 %925
      %927 = vrot.lane.b32.xlu0 %v859, 16
      %v928 = vpop.permute.xlu0 %927
      %929 = vrot.lane.b32.xlu0 %v860, 16
      %v930 = vpop.permute.xlu0 %929
      %931 = vrot.lane.b32.xlu0 %v861, 16
      %v932 = vpop.permute.xlu0 %931
      %933 = vrot.lane.b32.xlu0 %v862, 16
      %v934 = vpop.permute.xlu0 %933
      %935 = vrot.lane.b32.xlu0 %v863, 16
      %v936 = vpop.permute.xlu0 %935
      %937 = vrot.lane.b32.xlu0 %v864, 16
      %v938 = vpop.permute.xlu0 %937
      %939 = vrot.lane.b32.xlu0 %v865, 16
      %v940 = vpop.permute.xlu0 %939
      %941 = vrot.lane.b32.xlu0 %v866, 16
      %v942 = vpop.permute.xlu0 %941
      %943 = vrot.lane.b32.xlu0 %v867, 16
      %v944 = vpop.permute.xlu0 %943
      %945 = vrot.lane.b32.xlu0 %v868, 16
      %v946 = vpop.permute.xlu0 %945
      %947 = vrot.lane.b32.xlu0 %v869, 16
      %v948 = vpop.permute.xlu0 %947
      %949 = vrot.lane.b32.xlu0 %v870, 16
      %v950 = vpop.permute.xlu0 %949
      %951 = vrot.lane.b32.xlu0 %v871, 16
      %v952 = vpop.permute.xlu0 %951
      %953 = vrot.lane.b32.xlu0 %v872, 16
      %v954 = vpop.permute.xlu0 %953
      %955 = vrot.lane.b32.xlu0 %v873, 16
      %v956 = vpop.permute.xlu0 %955
      %957 = vrot.lane.b32.xlu0 %v874, 16
      %v958 = vpop.permute.xlu0 %957
      %959 = vrot.lane.b32.xlu0 %v875, 16
      %v960 = vpop.permute.xlu0 %959
      %961 = vrot.lane.b32.xlu0 %v876, 16
      %v962 = vpop.permute.xlu0 %961
      %963 = vrot.lane.b32.xlu0 %v877, 16
      %v964 = vpop.permute.xlu0 %963
      %965 = vrot.lane.b32.xlu0 %v878, 16
      %v966 = vpop.permute.xlu0 %965
      %967 = vrot.lane.b32.xlu0 %v879, 16
      %v968 = vpop.permute.xlu0 %967
      %969 = vrot.lane.b32.xlu0 %v880, 16
      %v970 = vpop.permute.xlu0 %969
      %971 = vrot.lane.b32.xlu0 %v881, 16
      %v972 = vpop.permute.xlu0 %971
      %973 = vrot.lane.b32.xlu0 %v882, 16
      %v974 = vpop.permute.xlu0 %973
      %975 = vrot.lane.b32.xlu0 %v883, 16
      %v976 = vpop.permute.xlu0 %975
      %977 = vrot.lane.b32.xlu0 %v884, 16
      %v978 = vpop.permute.xlu0 %977
      %979 = vrot.lane.b32.xlu0 %v885, 16
      %v980 = vpop.permute.xlu0 %979
      %981 = vrot.lane.b32.xlu0 %v886, 16
      %v982 = vpop.permute.xlu0 %981
      %vm1015 = vcmask 162944
      %1016 = vst.msk [vmem:[#allocation2] sm:$0xff] %vm1015, %v920
      %1017 = vst.msk [vmem:[#allocation2 + $0x8] sm:$0xff] %vm1015, %v922
      %1018 = vst.msk [vmem:[#allocation2 + $0x10] sm:$0xff] %vm1015, %v924
      %1019 = vst.msk [vmem:[#allocation2 + $0x18] sm:$0xff] %vm1015, %v926
      %1020 = vst.msk [vmem:[#allocation2 + $0x20] sm:$0xff] %vm1015, %v928
      %1021 = vst.msk [vmem:[#allocation2 + $0x28] sm:$0xff] %vm1015, %v930
      %1022 = vst.msk [vmem:[#allocation2 + $0x30] sm:$0xff] %vm1015, %v932
      %1023 = vst.msk [vmem:[#allocation2 + $0x38] sm:$0xff] %vm1015, %v934
      %1024 = vst.msk [vmem:[#allocation2 + $0x40] sm:$0xff] %vm1015, %v936
      %1025 = vst.msk [vmem:[#allocation2 + $0x48] sm:$0xff] %vm1015, %v938
      %1026 = vst.msk [vmem:[#allocation2 + $0x50] sm:$0xff] %vm1015, %v940
      %1027 = vst.msk [vmem:[#allocation2 + $0x58] sm:$0xff] %vm1015, %v942
      %1028 = vst.msk [vmem:[#allocation2 + $0x60] sm:$0xff] %vm1015, %v944
      %1029 = vst.msk [vmem:[#allocation2 + $0x68] sm:$0xff] %vm1015, %v946
      %1030 = vst.msk [vmem:[#allocation2 + $0x70] sm:$0xff] %vm1015, %v948
      %1031 = vst.msk [vmem:[#allocation2 + $0x78] sm:$0xff] %vm1015, %v950
      %1032 = vst.msk [vmem:[#allocation2 + $0x80] sm:$0xff] %vm1015, %v952
      %1033 = vst.msk [vmem:[#allocation2 + $0x88] sm:$0xff] %vm1015, %v954
      %1034 = vst.msk [vmem:[#allocation2 + $0x90] sm:$0xff] %vm1015, %v956
      %1035 = vst.msk [vmem:[#allocation2 + $0x98] sm:$0xff] %vm1015, %v958
      %1036 = vst.msk [vmem:[#allocation2 + $0xa0] sm:$0xff] %vm1015, %v960
      %1037 = vst.msk [vmem:[#allocation2 + $0xa8] sm:$0xff] %vm1015, %v962
      %1038 = vst.msk [vmem:[#allocation2 + $0xb0] sm:$0xff] %vm1015, %v964
      %1039 = vst.msk [vmem:[#allocation2 + $0xb8] sm:$0xff] %vm1015, %v966
      %1040 = vst.msk [vmem:[#allocation2 + $0xc0] sm:$0xff] %vm1015, %v968
      %1041 = vst.msk [vmem:[#allocation2 + $0xc8] sm:$0xff] %vm1015, %v970
      %1042 = vst.msk [vmem:[#allocation2 + $0xd0] sm:$0xff] %vm1015, %v972
      %1043 = vst.msk [vmem:[#allocation2 + $0xd8] sm:$0xff] %vm1015, %v974
      %1044 = vst.msk [vmem:[#allocation2 + $0xe0] sm:$0xff] %vm1015, %v976
      %1045 = vst.msk [vmem:[#allocation2 + $0xe8] sm:$0xff] %vm1015, %v978
      %1046 = vst.msk [vmem:[#allocation2 + $0xf0] sm:$0xff] %vm1015, %v980
      %1047 = vst.msk [vmem:[#allocation2 + $0xf8] sm:$0xff] %vm1015, %v982
      %v1048 = vld [vmem:[%s661 + $0x2] sm:$0xff]
      %v1049 = vld [vmem:[%s661 + $0xa] sm:$0xff]
      %v1050 = vld [vmem:[%s661 + $0x1a] sm:$0xff]
      %v1051 = vld [vmem:[%s661 + $0x22] sm:$0xff]
      %v1052 = vld [vmem:[%s661 + $0x32] sm:$0xff]
      %v1053 = vld [vmem:[%s661 + $0x3a] sm:$0xff]
      %v1054 = vld [vmem:[%s661 + $0x4a] sm:$0xff]
      %v1055 = vld [vmem:[%s661 + $0x52] sm:$0xff]
      %v1056 = vld [vmem:[%s661 + $0x62] sm:$0xff]
      %v1057 = vld [vmem:[%s661 + $0x6a] sm:$0xff]
      %v1058 = vld [vmem:[%s661 + $0x7a] sm:$0xff]
      %v1059 = vld [vmem:[%s661 + $0x82] sm:$0xff]
      %v1060 = vld [vmem:[%s661 + $0x92] sm:$0xff]
      %v1061 = vld [vmem:[%s661 + $0x9a] sm:$0xff]
      %v1062 = vld [vmem:[%s661 + $0xaa] sm:$0xff]
      %v1063 = vld [vmem:[%s661 + $0xb2] sm:$0xff]
      %v1064 = vld [vmem:[%s661 + $0xc2] sm:$0xff]
      %v1065 = vld [vmem:[%s661 + $0xca] sm:$0xff]
      %v1066 = vld [vmem:[%s661 + $0xda] sm:$0xff]
      %v1067 = vld [vmem:[%s661 + $0xe2] sm:$0xff]
      %v1068 = vld [vmem:[%s661 + $0xf2] sm:$0xff]
      %v1069 = vld [vmem:[%s661 + $0xfa] sm:$0xff]
      %v1070 = vld [vmem:[%s661 + $0x10a] sm:$0xff]
      %v1071 = vld [vmem:[%s661 + $0x112] sm:$0xff]
      %v1072 = vld [vmem:[%s661 + $0x122] sm:$0xff]
      %v1073 = vld [vmem:[%s661 + $0x12a] sm:$0xff]
      %v1074 = vld [vmem:[%s661 + $0x13a] sm:$0xff]
      %v1075 = vld [vmem:[%s661 + $0x142] sm:$0xff]
      %v1076 = vld [vmem:[%s661 + $0x152] sm:$0xff]
      %v1077 = vld [vmem:[%s661 + $0x15a] sm:$0xff]
      %v1078 = vld [vmem:[%s661 + $0x16a] sm:$0xff]
      %v1079 = vld [vmem:[%s661 + $0x172] sm:$0xff]
      %1112 = vrot.lane.b32.xlu0 %v1048, 20
      %v1113 = vpop.permute.xlu0 %1112
      %1114 = vrot.lane.b32.xlu0 %v1049, 20
      %v1115 = vpop.permute.xlu0 %1114
      %1116 = vrot.lane.b32.xlu0 %v1050, 20
      %v1117 = vpop.permute.xlu0 %1116
      %1118 = vrot.lane.b32.xlu0 %v1051, 20
      %v1119 = vpop.permute.xlu0 %1118
      %1120 = vrot.lane.b32.xlu0 %v1052, 20
      %v1121 = vpop.permute.xlu0 %1120
      %1122 = vrot.lane.b32.xlu0 %v1053, 20
      %v1123 = vpop.permute.xlu0 %1122
      %1124 = vrot.lane.b32.xlu0 %v1054, 20
      %v1125 = vpop.permute.xlu0 %1124
      %1126 = vrot.lane.b32.xlu0 %v1055, 20
      %v1127 = vpop.permute.xlu0 %1126
      %1128 = vrot.lane.b32.xlu0 %v1056, 20
      %v1129 = vpop.permute.xlu0 %1128
      %1130 = vrot.lane.b32.xlu0 %v1057, 20
      %v1131 = vpop.permute.xlu0 %1130
      %1132 = vrot.lane.b32.xlu0 %v1058, 20
      %v1133 = vpop.permute.xlu0 %1132
      %1134 = vrot.lane.b32.xlu0 %v1059, 20
      %v1135 = vpop.permute.xlu0 %1134
      %1136 = vrot.lane.b32.xlu0 %v1060, 20
      %v1137 = vpop.permute.xlu0 %1136
      %1138 = vrot.lane.b32.xlu0 %v1061, 20
      %v1139 = vpop.permute.xlu0 %1138
      %1140 = vrot.lane.b32.xlu0 %v1062, 20
      %v1141 = vpop.permute.xlu0 %1140
      %1142 = vrot.lane.b32.xlu0 %v1063, 20
      %v1143 = vpop.permute.xlu0 %1142
      %1144 = vrot.lane.b32.xlu0 %v1064, 20
      %v1145 = vpop.permute.xlu0 %1144
      %1146 = vrot.lane.b32.xlu0 %v1065, 20
      %v1147 = vpop.permute.xlu0 %1146
      %1148 = vrot.lane.b32.xlu0 %v1066, 20
      %v1149 = vpop.permute.xlu0 %1148
      %1150 = vrot.lane.b32.xlu0 %v1067, 20
      %v1151 = vpop.permute.xlu0 %1150
      %1152 = vrot.lane.b32.xlu0 %v1068, 20
      %v1153 = vpop.permute.xlu0 %1152
      %1154 = vrot.lane.b32.xlu0 %v1069, 20
      %v1155 = vpop.permute.xlu0 %1154
      %1156 = vrot.lane.b32.xlu0 %v1070, 20
      %v1157 = vpop.permute.xlu0 %1156
      %1158 = vrot.lane.b32.xlu0 %v1071, 20
      %v1159 = vpop.permute.xlu0 %1158
      %1160 = vrot.lane.b32.xlu0 %v1072, 20
      %v1161 = vpop.permute.xlu0 %1160
      %1162 = vrot.lane.b32.xlu0 %v1073, 20
      %v1163 = vpop.permute.xlu0 %1162
      %1164 = vrot.lane.b32.xlu0 %v1074, 20
      %v1165 = vpop.permute.xlu0 %1164
      %1166 = vrot.lane.b32.xlu0 %v1075, 20
      %v1167 = vpop.permute.xlu0 %1166
      %1168 = vrot.lane.b32.xlu0 %v1076, 20
      %v1169 = vpop.permute.xlu0 %1168
      %1170 = vrot.lane.b32.xlu0 %v1077, 20
      %v1171 = vpop.permute.xlu0 %1170
      %1172 = vrot.lane.b32.xlu0 %v1078, 20
      %v1173 = vpop.permute.xlu0 %1172
      %1174 = vrot.lane.b32.xlu0 %v1079, 20
      %v1175 = vpop.permute.xlu0 %1174
      %vm1208 = vcmask 195744
      %1209 = vst.msk [vmem:[#allocation2] sm:$0xff] %vm1208, %v1113
      %1210 = vst.msk [vmem:[#allocation2 + $0x8] sm:$0xff] %vm1208, %v1115
      %1211 = vst.msk [vmem:[#allocation2 + $0x10] sm:$0xff] %vm1208, %v1117
      %1212 = vst.msk [vmem:[#allocation2 + $0x18] sm:$0xff] %vm1208, %v1119
      %1213 = vst.msk [vmem:[#allocation2 + $0x20] sm:$0xff] %vm1208, %v1121
      %1214 = vst.msk [vmem:[#allocation2 + $0x28] sm:$0xff] %vm1208, %v1123
      %1215 = vst.msk [vmem:[#allocation2 + $0x30] sm:$0xff] %vm1208, %v1125
      %1216 = vst.msk [vmem:[#allocation2 + $0x38] sm:$0xff] %vm1208, %v1127
      %1217 = vst.msk [vmem:[#allocation2 + $0x40] sm:$0xff] %vm1208, %v1129
      %1218 = vst.msk [vmem:[#allocation2 + $0x48] sm:$0xff] %vm1208, %v1131
      %1219 = vst.msk [vmem:[#allocation2 + $0x50] sm:$0xff] %vm1208, %v1133
      %1220 = vst.msk [vmem:[#allocation2 + $0x58] sm:$0xff] %vm1208, %v1135
      %1221 = vst.msk [vmem:[#allocation2 + $0x60] sm:$0xff] %vm1208, %v1137
      %1222 = vst.msk [vmem:[#allocation2 + $0x68] sm:$0xff] %vm1208, %v1139
      %1223 = vst.msk [vmem:[#allocation2 + $0x70] sm:$0xff] %vm1208, %v1141
      %1224 = vst.msk [vmem:[#allocation2 + $0x78] sm:$0xff] %vm1208, %v1143
      %1225 = vst.msk [vmem:[#allocation2 + $0x80] sm:$0xff] %vm1208, %v1145
      %1226 = vst.msk [vmem:[#allocation2 + $0x88] sm:$0xff] %vm1208, %v1147
      %1227 = vst.msk [vmem:[#allocation2 + $0x90] sm:$0xff] %vm1208, %v1149
      %1228 = vst.msk [vmem:[#allocation2 + $0x98] sm:$0xff] %vm1208, %v1151
      %1229 = vst.msk [vmem:[#allocation2 + $0xa0] sm:$0xff] %vm1208, %v1153
      %1230 = vst.msk [vmem:[#allocation2 + $0xa8] sm:$0xff] %vm1208, %v1155
      %1231 = vst.msk [vmem:[#allocation2 + $0xb0] sm:$0xff] %vm1208, %v1157
      %1232 = vst.msk [vmem:[#allocation2 + $0xb8] sm:$0xff] %vm1208, %v1159
      %1233 = vst.msk [vmem:[#allocation2 + $0xc0] sm:$0xff] %vm1208, %v1161
      %1234 = vst.msk [vmem:[#allocation2 + $0xc8] sm:$0xff] %vm1208, %v1163
      %1235 = vst.msk [vmem:[#allocation2 + $0xd0] sm:$0xff] %vm1208, %v1165
      %1236 = vst.msk [vmem:[#allocation2 + $0xd8] sm:$0xff] %vm1208, %v1167
      %1237 = vst.msk [vmem:[#allocation2 + $0xe0] sm:$0xff] %vm1208, %v1169
      %1238 = vst.msk [vmem:[#allocation2 + $0xe8] sm:$0xff] %vm1208, %v1171
      %1239 = vst.msk [vmem:[#allocation2 + $0xf0] sm:$0xff] %vm1208, %v1173
      %1240 = vst.msk [vmem:[#allocation2 + $0xf8] sm:$0xff] %vm1208, %v1175
      %s1241 = scalar_lea.vmem %s198, 48
      %v1242 = vld [vmem:[%s1241] sm:$0xff]
      %v1243 = vld [vmem:[%s1241 + $0x8] sm:$0xff]
      %v1244 = vld [vmem:[%s1241 + $0x18] sm:$0xff]
      %v1245 = vld [vmem:[%s1241 + $0x20] sm:$0xff]
      %v1246 = vld [vmem:[%s1241 + $0x30] sm:$0xff]
      %v1247 = vld [vmem:[%s1241 + $0x38] sm:$0xff]
      %v1248 = vld [vmem:[%s1241 + $0x48] sm:$0xff]
      %v1249 = vld [vmem:[%s1241 + $0x50] sm:$0xff]
      %v1250 = vld [vmem:[%s1241 + $0x60] sm:$0xff]
      %v1251 = vld [vmem:[%s1241 + $0x68] sm:$0xff]
      %v1252 = vld [vmem:[%s1241 + $0x78] sm:$0xff]
      %v1253 = vld [vmem:[%s1241 + $0x80] sm:$0xff]
      %v1254 = vld [vmem:[%s1241 + $0x90] sm:$0xff]
      %v1255 = vld [vmem:[%s1241 + $0x98] sm:$0xff]
      %v1256 = vld [vmem:[%s1241 + $0xa8] sm:$0xff]
      %v1257 = vld [vmem:[%s1241 + $0xb0] sm:$0xff]
      %v1258 = vld [vmem:[%s1241 + $0xc0] sm:$0xff]
      %v1259 = vld [vmem:[%s1241 + $0xc8] sm:$0xff]
      %v1260 = vld [vmem:[%s1241 + $0xd8] sm:$0xff]
      %v1261 = vld [vmem:[%s1241 + $0xe0] sm:$0xff]
      %v1262 = vld [vmem:[%s1241 + $0xf0] sm:$0xff]
      %v1263 = vld [vmem:[%s1241 + $0xf8] sm:$0xff]
      %v1264 = vld [vmem:[%s1241 + $0x108] sm:$0xff]
      %v1265 = vld [vmem:[%s1241 + $0x110] sm:$0xff]
      %v1266 = vld [vmem:[%s1241 + $0x120] sm:$0xff]
      %v1267 = vld [vmem:[%s1241 + $0x128] sm:$0xff]
      %v1268 = vld [vmem:[%s1241 + $0x138] sm:$0xff]
      %v1269 = vld [vmem:[%s1241 + $0x140] sm:$0xff]
      %v1270 = vld [vmem:[%s1241 + $0x150] sm:$0xff]
      %v1271 = vld [vmem:[%s1241 + $0x158] sm:$0xff]
      %v1272 = vld [vmem:[%s1241 + $0x168] sm:$0xff]
      %v1273 = vld [vmem:[%s1241 + $0x170] sm:$0xff]
      %1306 = vrot.lane.b32.xlu0 %v1242, 24
      %v1307 = vpop.permute.xlu0 %1306
      %1308 = vrot.lane.b32.xlu0 %v1243, 24
      %v1309 = vpop.permute.xlu0 %1308
      %1310 = vrot.lane.b32.xlu0 %v1244, 24
      %v1311 = vpop.permute.xlu0 %1310
      %1312 = vrot.lane.b32.xlu0 %v1245, 24
      %v1313 = vpop.permute.xlu0 %1312
      %1314 = vrot.lane.b32.xlu0 %v1246, 24
      %v1315 = vpop.permute.xlu0 %1314
      %1316 = vrot.lane.b32.xlu0 %v1247, 24
      %v1317 = vpop.permute.xlu0 %1316
      %1318 = vrot.lane.b32.xlu0 %v1248, 24
      %v1319 = vpop.permute.xlu0 %1318
      %1320 = vrot.lane.b32.xlu0 %v1249, 24
      %v1321 = vpop.permute.xlu0 %1320
      %1322 = vrot.lane.b32.xlu0 %v1250, 24
      %v1323 = vpop.permute.xlu0 %1322
      %1324 = vrot.lane.b32.xlu0 %v1251, 24
      %v1325 = vpop.permute.xlu0 %1324
      %1326 = vrot.lane.b32.xlu0 %v1252, 24
      %v1327 = vpop.permute.xlu0 %1326
      %1328 = vrot.lane.b32.xlu0 %v1253, 24
      %v1329 = vpop.permute.xlu0 %1328
      %1330 = vrot.lane.b32.xlu0 %v1254, 24
      %v1331 = vpop.permute.xlu0 %1330
      %1332 = vrot.lane.b32.xlu0 %v1255, 24
      %v1333 = vpop.permute.xlu0 %1332
      %1334 = vrot.lane.b32.xlu0 %v1256, 24
      %v1335 = vpop.permute.xlu0 %1334
      %1336 = vrot.lane.b32.xlu0 %v1257, 24
      %v1337 = vpop.permute.xlu0 %1336
      %1338 = vrot.lane.b32.xlu0 %v1258, 24
      %v1339 = vpop.permute.xlu0 %1338
      %1340 = vrot.lane.b32.xlu0 %v1259, 24
      %v1341 = vpop.permute.xlu0 %1340
      %1342 = vrot.lane.b32.xlu0 %v1260, 24
      %v1343 = vpop.permute.xlu0 %1342
      %1344 = vrot.lane.b32.xlu0 %v1261, 24
      %v1345 = vpop.permute.xlu0 %1344
      %1346 = vrot.lane.b32.xlu0 %v1262, 24
      %v1347 = vpop.permute.xlu0 %1346
      %1348 = vrot.lane.b32.xlu0 %v1263, 24
      %v1349 = vpop.permute.xlu0 %1348
      %1350 = vrot.lane.b32.xlu0 %v1264, 24
      %v1351 = vpop.permute.xlu0 %1350
      %1352 = vrot.lane.b32.xlu0 %v1265, 24
      %v1353 = vpop.permute.xlu0 %1352
      %1354 = vrot.lane.b32.xlu0 %v1266, 24
      %v1355 = vpop.permute.xlu0 %1354
      %1356 = vrot.lane.b32.xlu0 %v1267, 24
      %v1357 = vpop.permute.xlu0 %1356
      %1358 = vrot.lane.b32.xlu0 %v1268, 24
      %v1359 = vpop.permute.xlu0 %1358
      %1360 = vrot.lane.b32.xlu0 %v1269, 24
      %v1361 = vpop.permute.xlu0 %1360
      %1362 = vrot.lane.b32.xlu0 %v1270, 24
      %v1363 = vpop.permute.xlu0 %1362
      %1364 = vrot.lane.b32.xlu0 %v1271, 24
      %v1365 = vpop.permute.xlu0 %1364
      %1366 = vrot.lane.b32.xlu0 %v1272, 24
      %v1367 = vpop.permute.xlu0 %1366
      %1368 = vrot.lane.b32.xlu0 %v1273, 24
      %v1369 = vpop.permute.xlu0 %1368
      %vm1402 = vcmask 228544
      %1403 = vst.msk [vmem:[#allocation2] sm:$0xff] %vm1402, %v1307
      %1404 = vst.msk [vmem:[#allocation2 + $0x8] sm:$0xff] %vm1402, %v1309
      %1405 = vst.msk [vmem:[#allocation2 + $0x10] sm:$0xff] %vm1402, %v1311
      %1406 = vst.msk [vmem:[#allocation2 + $0x18] sm:$0xff] %vm1402, %v1313
      %1407 = vst.msk [vmem:[#allocation2 + $0x20] sm:$0xff] %vm1402, %v1315
      %1408 = vst.msk [vmem:[#allocation2 + $0x28] sm:$0xff] %vm1402, %v1317
      %1409 = vst.msk [vmem:[#allocation2 + $0x30] sm:$0xff] %vm1402, %v1319
      %1410 = vst.msk [vmem:[#allocation2 + $0x38] sm:$0xff] %vm1402, %v1321
      %1411 = vst.msk [vmem:[#allocation2 + $0x40] sm:$0xff] %vm1402, %v1323
      %1412 = vst.msk [vmem:[#allocation2 + $0x48] sm:$0xff] %vm1402, %v1325
      %1413 = vst.msk [vmem:[#allocation2 + $0x50] sm:$0xff] %vm1402, %v1327
      %1414 = vst.msk [vmem:[#allocation2 + $0x58] sm:$0xff] %vm1402, %v1329
      %1415 = vst.msk [vmem:[#allocation2 + $0x60] sm:$0xff] %vm1402, %v1331
      %1416 = vst.msk [vmem:[#allocation2 + $0x68] sm:$0xff] %vm1402, %v1333
      %1417 = vst.msk [vmem:[#allocation2 + $0x70] sm:$0xff] %vm1402, %v1335
      %1418 = vst.msk [vmem:[#allocation2 + $0x78] sm:$0xff] %vm1402, %v1337
      %1419 = vst.msk [vmem:[#allocation2 + $0x80] sm:$0xff] %vm1402, %v1339
      %1420 = vst.msk [vmem:[#allocation2 + $0x88] sm:$0xff] %vm1402, %v1341
      %1421 = vst.msk [vmem:[#allocation2 + $0x90] sm:$0xff] %vm1402, %v1343
      %1422 = vst.msk [vmem:[#allocation2 + $0x98] sm:$0xff] %vm1402, %v1345
      %1423 = vst.msk [vmem:[#allocation2 + $0xa0] sm:$0xff] %vm1402, %v1347
      %1424 = vst.msk [vmem:[#allocation2 + $0xa8] sm:$0xff] %vm1402, %v1349
      %1425 = vst.msk [vmem:[#allocation2 + $0xb0] sm:$0xff] %vm1402, %v1351
      %1426 = vst.msk [vmem:[#allocation2 + $0xb8] sm:$0xff] %vm1402, %v1353
      %1427 = vst.msk [vmem:[#allocation2 + $0xc0] sm:$0xff] %vm1402, %v1355
      %1428 = vst.msk [vmem:[#allocation2 + $0xc8] sm:$0xff] %vm1402, %v1357
      %1429 = vst.msk [vmem:[#allocation2 + $0xd0] sm:$0xff] %vm1402, %v1359
      %1430 = vst.msk [vmem:[#allocation2 + $0xd8] sm:$0xff] %vm1402, %v1361
      %1431 = vst.msk [vmem:[#allocation2 + $0xe0] sm:$0xff] %vm1402, %v1363
      %1432 = vst.msk [vmem:[#allocation2 + $0xe8] sm:$0xff] %vm1402, %v1365
      %1433 = vst.msk [vmem:[#allocation2 + $0xf0] sm:$0xff] %vm1402, %v1367
      %1434 = vst.msk [vmem:[#allocation2 + $0xf8] sm:$0xff] %vm1402, %v1369
      %v1435 = vld [vmem:[%s1241 + $0x1] sm:$0xff]
      %v1436 = vld [vmem:[%s1241 + $0x9] sm:$0xff]
      %v1437 = vld [vmem:[%s1241 + $0x19] sm:$0xff]
      %v1438 = vld [vmem:[%s1241 + $0x21] sm:$0xff]
      %v1439 = vld [vmem:[%s1241 + $0x31] sm:$0xff]
      %v1440 = vld [vmem:[%s1241 + $0x39] sm:$0xff]
      %v1441 = vld [vmem:[%s1241 + $0x49] sm:$0xff]
      %v1442 = vld [vmem:[%s1241 + $0x51] sm:$0xff]
      %v1443 = vld [vmem:[%s1241 + $0x61] sm:$0xff]
      %v1444 = vld [vmem:[%s1241 + $0x69] sm:$0xff]
      %v1445 = vld [vmem:[%s1241 + $0x79] sm:$0xff]
      %v1446 = vld [vmem:[%s1241 + $0x81] sm:$0xff]
      %v1447 = vld [vmem:[%s1241 + $0x91] sm:$0xff]
      %v1448 = vld [vmem:[%s1241 + $0x99] sm:$0xff]
      %v1449 = vld [vmem:[%s1241 + $0xa9] sm:$0xff]
      %v1450 = vld [vmem:[%s1241 + $0xb1] sm:$0xff]
      %v1451 = vld [vmem:[%s1241 + $0xc1] sm:$0xff]
      %v1452 = vld [vmem:[%s1241 + $0xc9] sm:$0xff]
      %v1453 = vld [vmem:[%s1241 + $0xd9] sm:$0xff]
      %v1454 = vld [vmem:[%s1241 + $0xe1] sm:$0xff]
      %v1455 = vld [vmem:[%s1241 + $0xf1] sm:$0xff]
      %v1456 = vld [vmem:[%s1241 + $0xf9] sm:$0xff]
      %v1457 = vld [vmem:[%s1241 + $0x109] sm:$0xff]
      %v1458 = vld [vmem:[%s1241 + $0x111] sm:$0xff]
      %v1459 = vld [vmem:[%s1241 + $0x121] sm:$0xff]
      %v1460 = vld [vmem:[%s1241 + $0x129] sm:$0xff]
      %v1461 = vld [vmem:[%s1241 + $0x139] sm:$0xff]
      %v1462 = vld [vmem:[%s1241 + $0x141] sm:$0xff]
      %v1463 = vld [vmem:[%s1241 + $0x151] sm:$0xff]
      %v1464 = vld [vmem:[%s1241 + $0x159] sm:$0xff]
      %v1465 = vld [vmem:[%s1241 + $0x169] sm:$0xff]
      %v1466 = vld [vmem:[%s1241 + $0x171] sm:$0xff]
      %1499 = vrot.lane.b32.xlu0 %v1435, 28
      %v1500 = vpop.permute.xlu0 %1499
      %1501 = vrot.lane.b32.xlu0 %v1436, 28
      %v1502 = vpop.permute.xlu0 %1501
      %1503 = vrot.lane.b32.xlu0 %v1437, 28
      %v1504 = vpop.permute.xlu0 %1503
      %1505 = vrot.lane.b32.xlu0 %v1438, 28
      %v1506 = vpop.permute.xlu0 %1505
      %1507 = vrot.lane.b32.xlu0 %v1439, 28
      %v1508 = vpop.permute.xlu0 %1507
      %1509 = vrot.lane.b32.xlu0 %v1440, 28
      %v1510 = vpop.permute.xlu0 %1509
      %1511 = vrot.lane.b32.xlu0 %v1441, 28
      %v1512 = vpop.permute.xlu0 %1511
      %1513 = vrot.lane.b32.xlu0 %v1442, 28
      %v1514 = vpop.permute.xlu0 %1513
      %1515 = vrot.lane.b32.xlu0 %v1443, 28
      %v1516 = vpop.permute.xlu0 %1515
      %1517 = vrot.lane.b32.xlu0 %v1444, 28
      %v1518 = vpop.permute.xlu0 %1517
      %1519 = vrot.lane.b32.xlu0 %v1445, 28
      %v1520 = vpop.permute.xlu0 %1519
      %1521 = vrot.lane.b32.xlu0 %v1446, 28
      %v1522 = vpop.permute.xlu0 %1521
      %1523 = vrot.lane.b32.xlu0 %v1447, 28
      %v1524 = vpop.permute.xlu0 %1523
      %1525 = vrot.lane.b32.xlu0 %v1448, 28
      %v1526 = vpop.permute.xlu0 %1525
      %1527 = vrot.lane.b32.xlu0 %v1449, 28
      %v1528 = vpop.permute.xlu0 %1527
      %1529 = vrot.lane.b32.xlu0 %v1450, 28
      %v1530 = vpop.permute.xlu0 %1529
      %1531 = vrot.lane.b32.xlu0 %v1451, 28
      %v1532 = vpop.permute.xlu0 %1531
      %1533 = vrot.lane.b32.xlu0 %v1452, 28
      %v1534 = vpop.permute.xlu0 %1533
      %1535 = vrot.lane.b32.xlu0 %v1453, 28
      %v1536 = vpop.permute.xlu0 %1535
      %1537 = vrot.lane.b32.xlu0 %v1454, 28
      %v1538 = vpop.permute.xlu0 %1537
      %1539 = vrot.lane.b32.xlu0 %v1455, 28
      %v1540 = vpop.permute.xlu0 %1539
      %1541 = vrot.lane.b32.xlu0 %v1456, 28
      %v1542 = vpop.permute.xlu0 %1541
      %1543 = vrot.lane.b32.xlu0 %v1457, 28
      %v1544 = vpop.permute.xlu0 %1543
      %1545 = vrot.lane.b32.xlu0 %v1458, 28
      %v1546 = vpop.permute.xlu0 %1545
      %1547 = vrot.lane.b32.xlu0 %v1459, 28
      %v1548 = vpop.permute.xlu0 %1547
      %1549 = vrot.lane.b32.xlu0 %v1460, 28
      %v1550 = vpop.permute.xlu0 %1549
      %1551 = vrot.lane.b32.xlu0 %v1461, 28
      %v1552 = vpop.permute.xlu0 %1551
      %1553 = vrot.lane.b32.xlu0 %v1462, 28
      %v1554 = vpop.permute.xlu0 %1553
      %1555 = vrot.lane.b32.xlu0 %v1463, 28
      %v1556 = vpop.permute.xlu0 %1555
      %1557 = vrot.lane.b32.xlu0 %v1464, 28
      %v1558 = vpop.permute.xlu0 %1557
      %1559 = vrot.lane.b32.xlu0 %v1465, 28
      %v1560 = vpop.permute.xlu0 %1559
      %1561 = vrot.lane.b32.xlu0 %v1466, 28
      %v1562 = vpop.permute.xlu0 %1561
      %vm1595 = vcmask 261344
      %1596 = vst.msk [vmem:[#allocation2] sm:$0xff] %vm1595, %v1500
      %1597 = vst.msk [vmem:[#allocation2 + $0x8] sm:$0xff] %vm1595, %v1502
      %1598 = vst.msk [vmem:[#allocation2 + $0x10] sm:$0xff] %vm1595, %v1504
      %1599 = vst.msk [vmem:[#allocation2 + $0x18] sm:$0xff] %vm1595, %v1506
      %1600 = vst.msk [vmem:[#allocation2 + $0x20] sm:$0xff] %vm1595, %v1508
      %1601 = vst.msk [vmem:[#allocation2 + $0x28] sm:$0xff] %vm1595, %v1510
      %1602 = vst.msk [vmem:[#allocation2 + $0x30] sm:$0xff] %vm1595, %v1512
      %1603 = vst.msk [vmem:[#allocation2 + $0x38] sm:$0xff] %vm1595, %v1514
      %1604 = vst.msk [vmem:[#allocation2 + $0x40] sm:$0xff] %vm1595, %v1516
      %1605 = vst.msk [vmem:[#allocation2 + $0x48] sm:$0xff] %vm1595, %v1518
      %1606 = vst.msk [vmem:[#allocation2 + $0x50] sm:$0xff] %vm1595, %v1520
      %1607 = vst.msk [vmem:[#allocation2 + $0x58] sm:$0xff] %vm1595, %v1522
      %1608 = vst.msk [vmem:[#allocation2 + $0x60] sm:$0xff] %vm1595, %v1524
      %1609 = vst.msk [vmem:[#allocation2 + $0x68] sm:$0xff] %vm1595, %v1526
      %1610 = vst.msk [vmem:[#allocation2 + $0x70] sm:$0xff] %vm1595, %v1528
      %1611 = vst.msk [vmem:[#allocation2 + $0x78] sm:$0xff] %vm1595, %v1530
      %1612 = vst.msk [vmem:[#allocation2 + $0x80] sm:$0xff] %vm1595, %v1532
      %1613 = vst.msk [vmem:[#allocation2 + $0x88] sm:$0xff] %vm1595, %v1534
      %1614 = vst.msk [vmem:[#allocation2 + $0x90] sm:$0xff] %vm1595, %v1536
      %1615 = vst.msk [vmem:[#allocation2 + $0x98] sm:$0xff] %vm1595, %v1538
      %1616 = vst.msk [vmem:[#allocation2 + $0xa0] sm:$0xff] %vm1595, %v1540
      %1617 = vst.msk [vmem:[#allocation2 + $0xa8] sm:$0xff] %vm1595, %v1542
      %1618 = vst.msk [vmem:[#allocation2 + $0xb0] sm:$0xff] %vm1595, %v1544
      %1619 = vst.msk [vmem:[#allocation2 + $0xb8] sm:$0xff] %vm1595, %v1546
      %1620 = vst.msk [vmem:[#allocation2 + $0xc0] sm:$0xff] %vm1595, %v1548
      %1621 = vst.msk [vmem:[#allocation2 + $0xc8] sm:$0xff] %vm1595, %v1550
      %1622 = vst.msk [vmem:[#allocation2 + $0xd0] sm:$0xff] %vm1595, %v1552
      %1623 = vst.msk [vmem:[#allocation2 + $0xd8] sm:$0xff] %vm1595, %v1554
      %1624 = vst.msk [vmem:[#allocation2 + $0xe0] sm:$0xff] %vm1595, %v1556
      %1625 = vst.msk [vmem:[#allocation2 + $0xe8] sm:$0xff] %vm1595, %v1558
      %1626 = vst.msk [vmem:[#allocation2 + $0xf0] sm:$0xff] %vm1595, %v1560
      %1627 = vst.msk [vmem:[#allocation2 + $0xf8] sm:$0xff] %vm1595, %v1562
      %v1628 = vld [vmem:[%s1241 + $0x2] sm:$0xff]
      %v1629 = vld [vmem:[%s1241 + $0xa] sm:$0xff]
      %v1630 = vld [vmem:[%s1241 + $0x1a] sm:$0xff]
      %v1631 = vld [vmem:[%s1241 + $0x22] sm:$0xff]
      %v1632 = vld [vmem:[%s1241 + $0x32] sm:$0xff]
      %v1633 = vld [vmem:[%s1241 + $0x3a] sm:$0xff]
      %v1634 = vld [vmem:[%s1241 + $0x4a] sm:$0xff]
      %v1635 = vld [vmem:[%s1241 + $0x52] sm:$0xff]
      %v1636 = vld [vmem:[%s1241 + $0x62] sm:$0xff]
      %v1637 = vld [vmem:[%s1241 + $0x6a] sm:$0xff]
      %v1638 = vld [vmem:[%s1241 + $0x7a] sm:$0xff]
      %v1639 = vld [vmem:[%s1241 + $0x82] sm:$0xff]
      %v1640 = vld [vmem:[%s1241 + $0x92] sm:$0xff]
      %v1641 = vld [vmem:[%s1241 + $0x9a] sm:$0xff]
      %v1642 = vld [vmem:[%s1241 + $0xaa] sm:$0xff]
      %v1643 = vld [vmem:[%s1241 + $0xb2] sm:$0xff]
      %v1644 = vld [vmem:[%s1241 + $0xc2] sm:$0xff]
      %v1645 = vld [vmem:[%s1241 + $0xca] sm:$0xff]
      %v1646 = vld [vmem:[%s1241 + $0xda] sm:$0xff]
      %v1647 = vld [vmem:[%s1241 + $0xe2] sm:$0xff]
      %v1648 = vld [vmem:[%s1241 + $0xf2] sm:$0xff]
      %v1649 = vld [vmem:[%s1241 + $0xfa] sm:$0xff]
      %v1650 = vld [vmem:[%s1241 + $0x10a] sm:$0xff]
      %v1651 = vld [vmem:[%s1241 + $0x112] sm:$0xff]
      %v1652 = vld [vmem:[%s1241 + $0x122] sm:$0xff]
      %v1653 = vld [vmem:[%s1241 + $0x12a] sm:$0xff]
      %v1654 = vld [vmem:[%s1241 + $0x13a] sm:$0xff]
      %v1655 = vld [vmem:[%s1241 + $0x142] sm:$0xff]
      %v1656 = vld [vmem:[%s1241 + $0x152] sm:$0xff]
      %v1657 = vld [vmem:[%s1241 + $0x15a] sm:$0xff]
      %v1658 = vld [vmem:[%s1241 + $0x16a] sm:$0xff]
      %v1659 = vld [vmem:[%s1241 + $0x172] sm:$0xff]
      %1692 = vrot.lane.b32.xlu0 %v1628, 32
      %v1693 = vpop.permute.xlu0 %1692
      %1694 = vrot.lane.b32.xlu0 %v1629, 32
      %v1695 = vpop.permute.xlu0 %1694
      %1696 = vrot.lane.b32.xlu0 %v1630, 32
      %v1697 = vpop.permute.xlu0 %1696
      %1698 = vrot.lane.b32.xlu0 %v1631, 32
      %v1699 = vpop.permute.xlu0 %1698
      %1700 = vrot.lane.b32.xlu0 %v1632, 32
      %v1701 = vpop.permute.xlu0 %1700
      %1702 = vrot.lane.b32.xlu0 %v1633, 32
      %v1703 = vpop.permute.xlu0 %1702
      %1704 = vrot.lane.b32.xlu0 %v1634, 32
      %v1705 = vpop.permute.xlu0 %1704
      %1706 = vrot.lane.b32.xlu0 %v1635, 32
      %v1707 = vpop.permute.xlu0 %1706
      %1708 = vrot.lane.b32.xlu0 %v1636, 32
      %v1709 = vpop.permute.xlu0 %1708
      %1710 = vrot.lane.b32.xlu0 %v1637, 32
      %v1711 = vpop.permute.xlu0 %1710
      %1712 = vrot.lane.b32.xlu0 %v1638, 32
      %v1713 = vpop.permute.xlu0 %1712
      %1714 = vrot.lane.b32.xlu0 %v1639, 32
      %v1715 = vpop.permute.xlu0 %1714
      %1716 = vrot.lane.b32.xlu0 %v1640, 32
      %v1717 = vpop.permute.xlu0 %1716
      %1718 = vrot.lane.b32.xlu0 %v1641, 32
      %v1719 = vpop.permute.xlu0 %1718
      %1720 = vrot.lane.b32.xlu0 %v1642, 32
      %v1721 = vpop.permute.xlu0 %1720
      %1722 = vrot.lane.b32.xlu0 %v1643, 32
      %v1723 = vpop.permute.xlu0 %1722
      %1724 = vrot.lane.b32.xlu0 %v1644, 32
      %v1725 = vpop.permute.xlu0 %1724
      %1726 = vrot.lane.b32.xlu0 %v1645, 32
      %v1727 = vpop.permute.xlu0 %1726
      %1728 = vrot.lane.b32.xlu0 %v1646, 32
      %v1729 = vpop.permute.xlu0 %1728
      %1730 = vrot.lane.b32.xlu0 %v1647, 32
      %v1731 = vpop.permute.xlu0 %1730
      %1732 = vrot.lane.b32.xlu0 %v1648, 32
      %v1733 = vpop.permute.xlu0 %1732
      %1734 = vrot.lane.b32.xlu0 %v1649, 32
      %v1735 = vpop.permute.xlu0 %1734
      %1736 = vrot.lane.b32.xlu0 %v1650, 32
      %v1737 = vpop.permute.xlu0 %1736
      %1738 = vrot.lane.b32.xlu0 %v1651, 32
      %v1739 = vpop.permute.xlu0 %1738
      %1740 = vrot.lane.b32.xlu0 %v1652, 32
      %v1741 = vpop.permute.xlu0 %1740
      %1742 = vrot.lane.b32.xlu0 %v1653, 32
      %v1743 = vpop.permute.xlu0 %1742
      %1744 = vrot.lane.b32.xlu0 %v1654, 32
      %v1745 = vpop.permute.xlu0 %1744
      %1746 = vrot.lane.b32.xlu0 %v1655, 32
      %v1747 = vpop.permute.xlu0 %1746
      %1748 = vrot.lane.b32.xlu0 %v1656, 32
      %v1749 = vpop.permute.xlu0 %1748
      %1750 = vrot.lane.b32.xlu0 %v1657, 32
      %v1751 = vpop.permute.xlu0 %1750
      %1752 = vrot.lane.b32.xlu0 %v1658, 32
      %v1753 = vpop.permute.xlu0 %1752
      %1754 = vrot.lane.b32.xlu0 %v1659, 32
      %v1755 = vpop.permute.xlu0 %1754
      %vm1788 = vcmask 294144
      %1789 = vst.msk [vmem:[#allocation2] sm:$0xff] %vm1788, %v1693
      %1790 = vst.msk [vmem:[#allocation2 + $0x8] sm:$0xff] %vm1788, %v1695
      %1791 = vst.msk [vmem:[#allocation2 + $0x10] sm:$0xff] %vm1788, %v1697
      %1792 = vst.msk [vmem:[#allocation2 + $0x18] sm:$0xff] %vm1788, %v1699
      %1793 = vst.msk [vmem:[#allocation2 + $0x20] sm:$0xff] %vm1788, %v1701
      %1794 = vst.msk [vmem:[#allocation2 + $0x28] sm:$0xff] %vm1788, %v1703
      %1795 = vst.msk [vmem:[#allocation2 + $0x30] sm:$0xff] %vm1788, %v1705
      %1796 = vst.msk [vmem:[#allocation2 + $0x38] sm:$0xff] %vm1788, %v1707
      %1797 = vst.msk [vmem:[#allocation2 + $0x40] sm:$0xff] %vm1788, %v1709
      %1798 = vst.msk [vmem:[#allocation2 + $0x48] sm:$0xff] %vm1788, %v1711
      %1799 = vst.msk [vmem:[#allocation2 + $0x50] sm:$0xff] %vm1788, %v1713
      %1800 = vst.msk [vmem:[#allocation2 + $0x58] sm:$0xff] %vm1788, %v1715
      %1801 = vst.msk [vmem:[#allocation2 + $0x60] sm:$0xff] %vm1788, %v1717
      %1802 = vst.msk [vmem:[#allocation2 + $0x68] sm:$0xff] %vm1788, %v1719
      %1803 = vst.msk [vmem:[#allocation2 + $0x70] sm:$0xff] %vm1788, %v1721
      %1804 = vst.msk [vmem:[#allocation2 + $0x78] sm:$0xff] %vm1788, %v1723
      %1805 = vst.msk [vmem:[#allocation2 + $0x80] sm:$0xff] %vm1788, %v1725
      %1806 = vst.msk [vmem:[#allocation2 + $0x88] sm:$0xff] %vm1788, %v1727
      %1807 = vst.msk [vmem:[#allocation2 + $0x90] sm:$0xff] %vm1788, %v1729
      %1808 = vst.msk [vmem:[#allocation2 + $0x98] sm:$0xff] %vm1788, %v1731
      %1809 = vst.msk [vmem:[#allocation2 + $0xa0] sm:$0xff] %vm1788, %v1733
      %1810 = vst.msk [vmem:[#allocation2 + $0xa8] sm:$0xff] %vm1788, %v1735
      %1811 = vst.msk [vmem:[#allocation2 + $0xb0] sm:$0xff] %vm1788, %v1737
      %1812 = vst.msk [vmem:[#allocation2 + $0xb8] sm:$0xff] %vm1788, %v1739
      %1813 = vst.msk [vmem:[#allocation2 + $0xc0] sm:$0xff] %vm1788, %v1741
      %1814 = vst.msk [vmem:[#allocation2 + $0xc8] sm:$0xff] %vm1788, %v1743
      %1815 = vst.msk [vmem:[#allocation2 + $0xd0] sm:$0xff] %vm1788, %v1745
      %1816 = vst.msk [vmem:[#allocation2 + $0xd8] sm:$0xff] %vm1788, %v1747
      %1817 = vst.msk [vmem:[#allocation2 + $0xe0] sm:$0xff] %vm1788, %v1749
      %1818 = vst.msk [vmem:[#allocation2 + $0xe8] sm:$0xff] %vm1788, %v1751
      %1819 = vst.msk [vmem:[#allocation2 + $0xf0] sm:$0xff] %vm1788, %v1753
      %1820 = vst.msk [vmem:[#allocation2 + $0xf8] sm:$0xff] %vm1788, %v1755
      %v1821 = vld [vmem:[%s1] sm:$0xf]
      %v1822 = vld [vmem:[%s1 + $0x4] sm:$0xf]
      %v1823 = vld [vmem:[%s1 + $0x8] sm:$0xf]
      %v1824 = vld [vmem:[%s1 + $0xc] sm:$0xf]
      %v1825 = vld [vmem:[%s1 + $0x10] sm:$0x3]
      %v1826 = vunpack.c.l.bf16 %v1821
      %v1827 = vunpack.c.l.bf16 %v1822
      %v1828 = vunpack.c.l.bf16 %v1823
      %v1829 = vunpack.c.l.bf16 %v1824
      %v1830 = vunpack.c.l.bf16 %v1825
      %v1831 = vld [vmem:[#allocation2] sm:$0xff]
      %v1832 = vld [vmem:[#allocation2 + $0x8] sm:$0xff]
      %v1833 = vld [vmem:[#allocation2 + $0x10] sm:$0xff]
      %v1834 = vld [vmem:[#allocation2 + $0x18] sm:$0xff]
      %v1835 = vld [vmem:[#allocation2 + $0x20] sm:$0xff]
      %v1836 = vld [vmem:[#allocation2 + $0x28] sm:$0xff]
      %v1837 = vld [vmem:[#allocation2 + $0x30] sm:$0xff]
      %v1838 = vld [vmem:[#allocation2 + $0x38] sm:$0xff]
      %v1839 = vld [vmem:[#allocation2 + $0x40] sm:$0xff]
      %v1840 = vld [vmem:[#allocation2 + $0x48] sm:$0xff]
      %v1841 = vld [vmem:[#allocation2 + $0x50] sm:$0xff]
      %v1842 = vld [vmem:[#allocation2 + $0x58] sm:$0xff]
      %v1843 = vld [vmem:[#allocation2 + $0x60] sm:$0xff]
      %v1844 = vld [vmem:[#allocation2 + $0x68] sm:$0xff]
      %v1845 = vld [vmem:[#allocation2 + $0x70] sm:$0xff]
      %v1846 = vld [vmem:[#allocation2 + $0x78] sm:$0xff]
      %v1847 = vld [vmem:[#allocation2 + $0x80] sm:$0xff]
      %v1848 = vld [vmem:[#allocation2 + $0x88] sm:$0xff]
      %v1849 = vld [vmem:[#allocation2 + $0x90] sm:$0xff]
      %v1850 = vld [vmem:[#allocation2 + $0x98] sm:$0xff]
      %v1851 = vld [vmem:[#allocation2 + $0xa0] sm:$0xff]
      %v1852 = vld [vmem:[#allocation2 + $0xa8] sm:$0xff]
      %v1853 = vld [vmem:[#allocation2 + $0xb0] sm:$0xff]
      %v1854 = vld [vmem:[#allocation2 + $0xb8] sm:$0xff]
      %v1855 = vld [vmem:[#allocation2 + $0xc0] sm:$0xff]
      %v1856 = vld [vmem:[#allocation2 + $0xc8] sm:$0xff]
      %v1857 = vld [vmem:[#allocation2 + $0xd0] sm:$0xff]
      %v1858 = vld [vmem:[#allocation2 + $0xd8] sm:$0xff]
      %v1859 = vld [vmem:[#allocation2 + $0xe0] sm:$0xff]
      %v1860 = vld [vmem:[#allocation2 + $0xe8] sm:$0xff]
      %v1861 = vld [vmem:[#allocation2 + $0xf0] sm:$0xff]
      %v1862 = vld [vmem:[#allocation2 + $0xf8] sm:$0xff]
      %v1863 = vld [vmem:[%s2] sm:$0x1]
      %v1865 = vlaneseq
      %v1866 = vshrl.u32 %v1865, 7
      %v1867 = vsub.s32 0, %v1866
      %v1868 = vrot.slane %v1863, %v1867
      %vm1870 = vcmask 293888
      %v1872 = vsel %vm1870, %v1831, 0
      %v1875 = vsel %vm1870, %v1832, 0
      %v1878 = vsel %vm1870, %v1833, 0
      %v1881 = vsel %vm1870, %v1834, 0
      %v1884 = vsel %vm1870, %v1835, 0
      %v1887 = vsel %vm1870, %v1836, 0
      %v1890 = vsel %vm1870, %v1837, 0
      %v1893 = vsel %vm1870, %v1838, 0
      %v1896 = vsel %vm1870, %v1839, 0
      %v1899 = vsel %vm1870, %v1840, 0
      %v1902 = vsel %vm1870, %v1841, 0
      %v1905 = vsel %vm1870, %v1842, 0
      %v1908 = vsel %vm1870, %v1843, 0
      %v1911 = vsel %vm1870, %v1844, 0
      %v1914 = vsel %vm1870, %v1845, 0
      %v1917 = vsel %vm1870, %v1846, 0
      %v1920 = vsel %vm1870, %v1847, 0
      %v1923 = vsel %vm1870, %v1848, 0
      %v1926 = vsel %vm1870, %v1849, 0
      %v1929 = vsel %vm1870, %v1850, 0
      %v1932 = vsel %vm1870, %v1851, 0
      %v1935 = vsel %vm1870, %v1852, 0
      %v1938 = vsel %vm1870, %v1853, 0
      %v1941 = vsel %vm1870, %v1854, 0
      %v1944 = vsel %vm1870, %v1855, 0
      %v1947 = vsel %vm1870, %v1856, 0
      %v1950 = vsel %vm1870, %v1857, 0
      %v1953 = vsel %vm1870, %v1858, 0
      %v1956 = vsel %vm1870, %v1859, 0
      %v1959 = vsel %vm1870, %v1860, 0
      %v1962 = vsel %vm1870, %v1861, 0
      %v1965 = vsel %vm1870, %v1862, 0
      %vm1967 = vcmask 1043456
      %v1969 = vsel %vm1967, %v1830, 0
      %1971 = vmatprep.subr.mxu0 0.0
      %1972 = vmatpush1.msra.mxu0 %v1826
      %1973 = vmatprep.subr.mxu0 0.0
      %1974 = vmatpush1.msra.mxu0 %v1827
      %1975 = vmatprep.subr.mxu0 0.0
      %1976 = vmatpush1.msra.mxu0 %v1828
      %1977 = vmatprep.subr.mxu0 0.0
      %1978 = vmatpush1.msra.mxu0 %v1829
      %1979 = vmatprep.subr.mxu0 0.0
      %1980 = vmatpush1.msra.mxu0 %v1969
      %1981 = vmatprep.subr.mxu0 0.0
      %1982 = vmatpush1.msra.mxu0 0.0
      %1983 = vmatprep.subr.mxu0 0.0
      %1984 = vmatpush1.msra.mxu0 0.0
      %1985 = vmatprep.subr.mxu0 0.0
      %1986 = vmatpush1.msra.mxu0 0.0
      %1987 = vmatprep.subr.mxu0 0.0
      %1988 = vmatpush1.msra.mxu0 0.0
      %1989 = vmatprep.subr.mxu0 0.0
      %1990 = vmatpush1.msra.mxu0 0.0
      %1991 = vmatprep.subr.mxu0 0.0
      %1992 = vmatpush1.msra.mxu0 0.0
      %1993 = vmatprep.subr.mxu0 0.0
      %1994 = vmatpush1.msra.mxu0 0.0
      %1995 = vmatprep.subr.mxu0 0.0
      %1996 = vmatpush1.msra.mxu0 0.0
      %1997 = vmatprep.subr.mxu0 0.0
      %1998 = vmatpush1.msra.mxu0 0.0
      %1999 = vmatprep.subr.mxu0 0.0
      %2000 = vmatpush1.msra.mxu0 0.0
      %2001 = vmatprep.subr.mxu0 0.0
      %2002 = vmatpush1.msra.mxu0 0.0
      %2003 = vmatprep.subr.mxu0 0.0
      %2004 = vmatpush1.msra.mxu0 0.0
      %2005 = vmatprep.subr.mxu0 0.0
      %2006 = vmatpush1.msra.mxu0 0.0
      %2007 = vmatprep.subr.mxu0 0.0
      %2008 = vmatpush1.msra.mxu0 0.0
      %2009 = vmatprep.subr.mxu0 0.0
      %2010 = vmatpush1.msra.mxu0 0.0
      %2011 = vmatprep.subr.mxu0 0.0
      %2012 = vmatpush1.msra.mxu0 0.0
      %2013 = vmatprep.subr.mxu0 0.0
      %2014 = vmatpush1.msra.mxu0 0.0
      %2015 = vmatprep.subr.mxu0 0.0
      %2016 = vmatpush1.msra.mxu0 0.0
      %2017 = vmatprep.subr.mxu0 0.0
      %2018 = vmatpush1.msra.mxu0 0.0
      %2019 = vmatprep.subr.mxu0 0.0
      %2020 = vmatpush1.msra.mxu0 0.0
      %2021 = vmatprep.subr.mxu0 0.0
      %2022 = vmatpush1.msra.mxu0 0.0
      %2023 = vmatprep.subr.mxu0 0.0
      %2024 = vmatpush1.msra.mxu0 0.0
      %2025 = vmatprep.subr.mxu0 0.0
      %2026 = vmatpush1.msra.mxu0 0.0
      %2027 = vmatprep.subr.mxu0 0.0
      %2028 = vmatpush1.msra.mxu0 0.0
      %2029 = vmatprep.subr.mxu0 0.0
      %2030 = vmatpush1.msra.mxu0 0.0
      %2031 = vmatprep.subr.mxu0 0.0
      %2032 = vmatpush1.msra.mxu0 0.0
      %2033 = vmatprep.subr.mxu0 0.0
      %2034 = vmatpush1.msra.mxu0 0.0
      %2035 = vmatprep.mubr.f32.mxu0 0.0
      %2036 = vmatmul.mubr.f32.gmra.mrb[0].mxu0 %v1872
      %v2037 = vpop.f32.mrb[0].mxu0
      %v2038 = vadd.f32 %v1868, %v2037
      %v2039 = vpop.f32.mrb[0].mxu0
      %2040 = vmatprep.mubr.f32.mxu0 0.0
      %2041 = vmatmul.mubr.f32.gmra.mrb[0].mxu0 %v1875
      %v2042 = vpop.f32.mrb[0].mxu0
      %v2043 = vadd.f32 %v1868, %v2042
      %v2044 = vpop.f32.mrb[0].mxu0
      %2045 = vmatprep.mubr.f32.mxu0 0.0
      %2046 = vmatmul.mubr.f32.gmra.mrb[0].mxu0 %v1878
      %v2047 = vpop.f32.mrb[0].mxu0
      %v2048 = vadd.f32 %v1868, %v2047
      %v2049 = vpop.f32.mrb[0].mxu0
      %2050 = vmatprep.mubr.f32.mxu0 0.0
      %2051 = vmatmul.mubr.f32.gmra.mrb[0].mxu0 %v1881
      %v2052 = vpop.f32.mrb[0].mxu0
      %v2053 = vadd.f32 %v1868, %v2052
      %v2054 = vpop.f32.mrb[0].mxu0
      %2055 = vmatprep.mubr.f32.mxu0 0.0
      %2056 = vmatmul.mubr.f32.gmra.mrb[0].mxu0 %v1884
      %v2057 = vpop.f32.mrb[0].mxu0
      %v2058 = vadd.f32 %v1868, %v2057
      %v2059 = vpop.f32.mrb[0].mxu0
      %2060 = vmatprep.mubr.f32.mxu0 0.0
      %2061 = vmatmul.mubr.f32.gmra.mrb[0].mxu0 %v1887
      %v2062 = vpop.f32.mrb[0].mxu0
      %v2063 = vadd.f32 %v1868, %v2062
      %v2064 = vpop.f32.mrb[0].mxu0
      %2065 = vmatprep.mubr.f32.mxu0 0.0
      %2066 = vmatmul.mubr.f32.gmra.mrb[0].mxu0 %v1890
      %v2067 = vpop.f32.mrb[0].mxu0
      %v2068 = vadd.f32 %v1868, %v2067
      %v2069 = vpop.f32.mrb[0].mxu0
      %2070 = vmatprep.mubr.f32.mxu0 0.0
      %2071 = vmatmul.mubr.f32.gmra.mrb[0].mxu0 %v1893
      %v2072 = vpop.f32.mrb[0].mxu0
      %v2073 = vadd.f32 %v1868, %v2072
      %v2074 = vpop.f32.mrb[0].mxu0
      %2075 = vmatprep.mubr.f32.mxu0 0.0
      %2076 = vmatmul.mubr.f32.gmra.mrb[0].mxu0 %v1896
      %v2077 = vpop.f32.mrb[0].mxu0
      %v2078 = vadd.f32 %v1868, %v2077
      %v2079 = vpop.f32.mrb[0].mxu0
      %2080 = vmatprep.mubr.f32.mxu0 0.0
      %2081 = vmatmul.mubr.f32.gmra.mrb[0].mxu0 %v1899
      %v2082 = vpop.f32.mrb[0].mxu0
      %v2083 = vadd.f32 %v1868, %v2082
      %v2084 = vpop.f32.mrb[0].mxu0
      %2085 = vmatprep.mubr.f32.mxu0 0.0
      %2086 = vmatmul.mubr.f32.gmra.mrb[0].mxu0 %v1902
      %v2087 = vpop.f32.mrb[0].mxu0
      %v2088 = vadd.f32 %v1868, %v2087
      %v2089 = vpop.f32.mrb[0].mxu0
      %2090 = vmatprep.mubr.f32.mxu0 0.0
      %2091 = vmatmul.mubr.f32.gmra.mrb[0].mxu0 %v1905
      %v2092 = vpop.f32.mrb[0].mxu0
      %v2093 = vadd.f32 %v1868, %v2092
      %v2094 = vpop.f32.mrb[0].mxu0
      %2095 = vmatprep.mubr.f32.mxu0 0.0
      %2096 = vmatmul.mubr.f32.gmra.mrb[0].mxu0 %v1908
      %v2097 = vpop.f32.mrb[0].mxu0
      %v2098 = vadd.f32 %v1868, %v2097
      %v2099 = vpop.f32.mrb[0].mxu0
      %2100 = vmatprep.mubr.f32.mxu0 0.0
      %2101 = vmatmul.mubr.f32.gmra.mrb[0].mxu0 %v1911
      %v2102 = vpop.f32.mrb[0].mxu0
      %v2103 = vadd.f32 %v1868, %v2102
      %v2104 = vpop.f32.mrb[0].mxu0
      %2105 = vmatprep.mubr.f32.mxu0 0.0
      %2106 = vmatmul.mubr.f32.gmra.mrb[0].mxu0 %v1914
      %v2107 = vpop.f32.mrb[0].mxu0
      %v2108 = vadd.f32 %v1868, %v2107
      %v2109 = vpop.f32.mrb[0].mxu0
      %2110 = vmatprep.mubr.f32.mxu0 0.0
      %2111 = vmatmul.mubr.f32.gmra.mrb[0].mxu0 %v1917
      %v2112 = vpop.f32.mrb[0].mxu0
      %v2113 = vadd.f32 %v1868, %v2112
      %v2114 = vpop.f32.mrb[0].mxu0
      %2115 = vmatprep.mubr.f32.mxu0 0.0
      %2116 = vmatmul.mubr.f32.gmra.mrb[0].mxu0 %v1920
      %v2117 = vpop.f32.mrb[0].mxu0
      %v2118 = vadd.f32 %v1868, %v2117
      %v2119 = vpop.f32.mrb[0].mxu0
      %2120 = vmatprep.mubr.f32.mxu0 0.0
      %2121 = vmatmul.mubr.f32.gmra.mrb[0].mxu0 %v1923
      %v2122 = vpop.f32.mrb[0].mxu0
      %v2123 = vadd.f32 %v1868, %v2122
      %v2124 = vpop.f32.mrb[0].mxu0
      %2125 = vmatprep.mubr.f32.mxu0 0.0
      %2126 = vmatmul.mubr.f32.gmra.mrb[0].mxu0 %v1926
      %v2127 = vpop.f32.mrb[0].mxu0
      %v2128 = vadd.f32 %v1868, %v2127
      %v2129 = vpop.f32.mrb[0].mxu0
      %2130 = vmatprep.mubr.f32.mxu0 0.0
      %2131 = vmatmul.mubr.f32.gmra.mrb[0].mxu0 %v1929
      %v2132 = vpop.f32.mrb[0].mxu0
      %v2133 = vadd.f32 %v1868, %v2132
      %v2134 = vpop.f32.mrb[0].mxu0
      %2135 = vmatprep.mubr.f32.mxu0 0.0
      %2136 = vmatmul.mubr.f32.gmra.mrb[0].mxu0 %v1932
      %v2137 = vpop.f32.mrb[0].mxu0
      %v2138 = vadd.f32 %v1868, %v2137
      %v2139 = vpop.f32.mrb[0].mxu0
      %2140 = vmatprep.mubr.f32.mxu0 0.0
      %2141 = vmatmul.mubr.f32.gmra.mrb[0].mxu0 %v1935
      %v2142 = vpop.f32.mrb[0].mxu0
      %v2143 = vadd.f32 %v1868, %v2142
      %v2144 = vpop.f32.mrb[0].mxu0
      %2145 = vmatprep.mubr.f32.mxu0 0.0
      %2146 = vmatmul.mubr.f32.gmra.mrb[0].mxu0 %v1938
      %v2147 = vpop.f32.mrb[0].mxu0
      %v2148 = vadd.f32 %v1868, %v2147
      %v2149 = vpop.f32.mrb[0].mxu0
      %2150 = vmatprep.mubr.f32.mxu0 0.0
      %2151 = vmatmul.mubr.f32.gmra.mrb[0].mxu0 %v1941
      %v2152 = vpop.f32.mrb[0].mxu0
      %v2153 = vadd.f32 %v1868, %v2152
      %v2154 = vpop.f32.mrb[0].mxu0
      %2155 = vmatprep.mubr.f32.mxu0 0.0
      %2156 = vmatmul.mubr.f32.gmra.mrb[0].mxu0 %v1944
      %v2157 = vpop.f32.mrb[0].mxu0
      %v2158 = vadd.f32 %v1868, %v2157
      %v2159 = vpop.f32.mrb[0].mxu0
      %2160 = vmatprep.mubr.f32.mxu0 0.0
      %2161 = vmatmul.mubr.f32.gmra.mrb[0].mxu0 %v1947
      %v2162 = vpop.f32.mrb[0].mxu0
      %v2163 = vadd.f32 %v1868, %v2162
      %v2164 = vpop.f32.mrb[0].mxu0
      %2165 = vmatprep.mubr.f32.mxu0 0.0
      %2166 = vmatmul.mubr.f32.gmra.mrb[0].mxu0 %v1950
      %v2167 = vpop.f32.mrb[0].mxu0
      %v2168 = vadd.f32 %v1868, %v2167
      %v2169 = vpop.f32.mrb[0].mxu0
      %2170 = vmatprep.mubr.f32.mxu0 0.0
      %2171 = vmatmul.mubr.f32.gmra.mrb[0].mxu0 %v1953
      %v2172 = vpop.f32.mrb[0].mxu0
      %v2173 = vadd.f32 %v1868, %v2172
      %v2174 = vpop.f32.mrb[0].mxu0
      %2175 = vmatprep.mubr.f32.mxu0 0.0
      %2176 = vmatmul.mubr.f32.gmra.mrb[0].mxu0 %v1956
      %v2177 = vpop.f32.mrb[0].mxu0
      %v2178 = vadd.f32 %v1868, %v2177
      %v2179 = vpop.f32.mrb[0].mxu0
      %2180 = vmatprep.mubr.f32.mxu0 0.0
      %2181 = vmatmul.mubr.f32.gmra.mrb[0].mxu0 %v1959
      %v2182 = vpop.f32.mrb[0].mxu0
      %v2183 = vadd.f32 %v1868, %v2182
      %v2184 = vpop.f32.mrb[0].mxu0
      %2185 = vmatprep.mubr.f32.mxu0 0.0
      %2186 = vmatmul.mubr.f32.gmra.mrb[0].mxu0 %v1962
      %v2187 = vpop.f32.mrb[0].mxu0
      %v2188 = vadd.f32 %v1868, %v2187
      %v2189 = vpop.f32.mrb[0].mxu0
      %2190 = vmatprep.mubr.f32.mxu0 0.0
      %2191 = vmatmul.mubr.f32.gmra.mrb[0].mxu0 %v1965
      %v2192 = vpop.f32.mrb[0].mxu0
      %v2193 = vadd.f32 %v1868, %v2192
      %v2194 = vpop.f32.mrb[0].mxu0
      %2195 = vdwg.mxu0
      %vm2196 = vcmask 64512
      %2197 = vst.msk [vmem:[%s208] sm:$0xff] %vm2196, %v2038
      %2198 = vst.msk [vmem:[%s208 + $0x8] sm:$0xff] %vm2196, %v2043
      %2199 = vst.msk [vmem:[%s208 + $0x10] sm:$0xff] %vm2196, %v2048
      %2200 = vst.msk [vmem:[%s208 + $0x18] sm:$0xff] %vm2196, %v2053
      %2201 = vst.msk [vmem:[%s208 + $0x20] sm:$0xff] %vm2196, %v2058
      %2202 = vst.msk [vmem:[%s208 + $0x28] sm:$0xff] %vm2196, %v2063
      %2203 = vst.msk [vmem:[%s208 + $0x30] sm:$0xff] %vm2196, %v2068
      %2204 = vst.msk [vmem:[%s208 + $0x38] sm:$0xff] %vm2196, %v2073
      %2205 = vst.msk [vmem:[%s208 + $0x40] sm:$0xff] %vm2196, %v2078
      %2206 = vst.msk [vmem:[%s208 + $0x48] sm:$0xff] %vm2196, %v2083
      %2207 = vst.msk [vmem:[%s208 + $0x50] sm:$0xff] %vm2196, %v2088
      %2208 = vst.msk [vmem:[%s208 + $0x58] sm:$0xff] %vm2196, %v2093
      %2209 = vst.msk [vmem:[%s208 + $0x60] sm:$0xff] %vm2196, %v2098
      %2210 = vst.msk [vmem:[%s208 + $0x68] sm:$0xff] %vm2196, %v2103
      %2211 = vst.msk [vmem:[%s208 + $0x70] sm:$0xff] %vm2196, %v2108
      %2212 = vst.msk [vmem:[%s208 + $0x78] sm:$0xff] %vm2196, %v2113
      %2213 = vst.msk [vmem:[%s208 + $0x80] sm:$0xff] %vm2196, %v2118
      %2214 = vst.msk [vmem:[%s208 + $0x88] sm:$0xff] %vm2196, %v2123
      %2215 = vst.msk [vmem:[%s208 + $0x90] sm:$0xff] %vm2196, %v2128
      %2216 = vst.msk [vmem:[%s208 + $0x98] sm:$0xff] %vm2196, %v2133
      %2217 = vst.msk [vmem:[%s208 + $0xa0] sm:$0xff] %vm2196, %v2138
      %2218 = vst.msk [vmem:[%s208 + $0xa8] sm:$0xff] %vm2196, %v2143
      %2219 = vst.msk [vmem:[%s208 + $0xb0] sm:$0xff] %vm2196, %v2148
      %2220 = vst.msk [vmem:[%s208 + $0xb8] sm:$0xff] %vm2196, %v2153
      %2221 = vst.msk [vmem:[%s208 + $0xc0] sm:$0xff] %vm2196, %v2158
      %2222 = vst.msk [vmem:[%s208 + $0xc8] sm:$0xff] %vm2196, %v2163
      %2223 = vst.msk [vmem:[%s208 + $0xd0] sm:$0xff] %vm2196, %v2168
      %2224 = vst.msk [vmem:[%s208 + $0xd8] sm:$0xff] %vm2196, %v2173
      %2225 = vst.msk [vmem:[%s208 + $0xe0] sm:$0xff] %vm2196, %v2178
      %2226 = vst.msk [vmem:[%s208 + $0xe8] sm:$0xff] %vm2196, %v2183
      %2227 = vst.msk [vmem:[%s208 + $0xf0] sm:$0xff] %vm2196, %v2188
      %2228 = vst.msk [vmem:[%s208 + $0xf8] sm:$0xff] %vm2196, %v2193
      %s2229 = smul.u32 16, %s19
      %p2230 = scmp.lt.s32.totalorder %s18, 1
      %s2231 = scalar_select %p2230, %s18, 1
      %p2232 = scmp.lt.s32.totalorder %s2229, 15
      %s2233 = scalar_select %p2232, %s2229, 15
      %s2234 = smul.addr %s2233, 2
      %s2235 = smul.addr %s2231, 32
      %s2236 = sadd.s32 %s2234, %s2235
      %s2237 = smul.addr %s2236, 8
      %s2238 = scalar_lea.vmem %s3, %s2237
      // Predicated region
      $region33: #{tpu_custom_call.1} parent=31 // pred_check
        %p2239 = pneg %p116
      $region34: #{tpu_custom_call.1} parent=31 // pred_check_branch
        %2241 = sbr.rel (%p2239) target = $region36
      $region35: #{tpu_custom_call.1} parent=31 // pred_region
        %s2242 = smul.u32 16, %s19
      $region36: #{tpu_custom_call.1} parent=31 // pred_fallthru
        _
    $region32: #{tpu_custom_call.1} parent=5 // pred_fallthru
      _
    %p2243 = scmp.le.s32.totalorder 2, %s9
    // Predicated region
    $region37: #{tpu_custom_call.1} parent=5 // pred_check
      %p2244 = pneg %p2243
    $region38: #{tpu_custom_call.1} parent=5 // pred_check_branch
      %2246 = sbr.rel (%p2244) target = $region40
    $region39: #{tpu_custom_call.1} parent=5 // pred_region
      %s2247 = ssub.s32 %s9, 2
      // Predicated region
      $region41: #{tpu_custom_call.1} parent=39 // pred_check
        %p2248 = pneg %p122
      $region42: #{tpu_custom_call.1} parent=39 // pred_check_branch
        %2250 = sbr.rel (%p2248) target = $region44
      $region43: #{tpu_custom_call.1} parent=39 // pred_region
        %s2251 = smul.u32 16, %s21
        %p2252 = scmp.lt.s32.totalorder %s20, 1
        %s2253 = scalar_select %p2252, %s20, 1
        %p2254 = scmp.lt.s32.totalorder %s2251, 15
        %s2255 = scalar_select %p2254, %s2251, 15
        %s2256 = smul.addr %s2255, 2
        %s2257 = smul.addr %s2253, 32
        %s2258 = sadd.s32 %s2256, %s2257
        %s2259 = smul.addr %s2258, 8
        %s2260 = scalar_lea.vmem %s3, %s2259
      $region44: #{tpu_custom_call.1} parent=39 // pred_fallthru
        _
    $region40: #{tpu_custom_call.1} parent=5 // pred_fallthru
      _
  $region6: #{tpu_custom_call.1} parent=0 // loop_footer
    %s13 = sadd.s32 1, %s9
  $region7: #{tpu_custom_call.1} parent=0 // loop_footer_branch
    %8 = sbr.rel target = $region3
  $region8: #{tpu_custom_call.1} parent=0 // loop_exit
    _

</llo_original>
